<compile_context>
chip_gen: v6e
topology: v6e:2x2x1
jax: 0.10.0
libtpu: 0.0.40
codegen_flags: <defaults>
</compile_context>

<pallas_src>
import math

import jax
import jax.numpy as jnp
from jax.experimental import pallas as pl
from jax.experimental.pallas import tpu as pltpu

# --------------------------------------------------------------------------
# Deterministic stand-in "RPC" / projection parameters (see TODO above).
LON0, LAT0 = 120.0, 30.0
P2O = ((2.0e-3, 5.0e-4, 1.0e-5),    # lon = LON0 + a00*r + a01*c + a02*h
       (-3.0e-4, 1.5e-3, 2.0e-5))   # lat = LAT0 + a10*r + a11*c + a12*h
_DET2 = P2O[0][0] * P2O[1][1] - P2O[0][1] * P2O[1][0]
_INV_DET2 = 1.0 / _DET2
MERC_K = 1.0e3                      # stand-in mercator scale
_INV_MERC_K = 1.0 / MERC_K

HEIGHT_TOLERANCE = 5.0
CLAMP_MAX = 1000.0
LOSS_HEIGHT_WEIGHT = 10.0
_EPS = 1e-20
LANE_TILE = 512                     # lanes per in-kernel tile (multiple of 128)


def _rpc_photo2obj(r, c, h):
    lon = LON0 + P2O[0][0] * r + P2O[0][1] * c + P2O[0][2] * h
    lat = LAT0 + P2O[1][0] * r + P2O[1][1] * c + P2O[1][2] * h
    return lon, lat


def _rpc_obj2photo(lon, lat, h):
    u = lon - LON0 - P2O[0][2] * h
    v = lat - LAT0 - P2O[1][2] * h
    r = (P2O[1][1] * u - P2O[0][1] * v) * _INV_DET2
    c = (-P2O[1][0] * u + P2O[0][0] * v) * _INV_DET2
    return r, c


def _project_mercator(lon, lat):
    return MERC_K * lon, MERC_K * lat


def _mercator2lonlat(x, y):
    return x * _INV_MERC_K, y * _INV_MERC_K


# --------------------------------------------------------------------------
def _make_kernel(n_real, nl, tile):
    """Build the Pallas kernel for n_real points packed into (64, nl)."""
    nt = nl // tile                      # fori_loop trip count
    nsub = tile // 128                   # 128-lane blocks per tile
    inv_n = 1.0 / n_real
    inv_nm1 = 1.0 / max(n_real - 1, 1)
    f32 = jnp.float32

    def kernel(s_ref, d_ref, out_ref):
        # scalar constants precomputed host-side (SMEM)
        conf_hi = s_ref[1]               # 0.5 + prog*0.4
        conf_lo = s_ref[2]               # 0.5 - prog*0.4
        t_cl = s_ref[3]                  # tanh-clamp scale t
        inv_t = s_ref[4]                 # 1/t

        def load(c, j0):                 # channel c, lane tile at j0 -> (8, tile)
            return d_ref[pl.ds(8 * c, 8), pl.ds(j0, tile)]

        def fold(x):                     # (8, tile) -> (8, 128) via VPU adds
            acc = x[:, 0:128]
            for k in range(1, nsub):
                acc = acc + x[:, k * 128:(k + 1) * 128]
            return acc

        def rsum(a):                     # (8, 128) -> (1, 1)
            return jnp.sum(jnp.sum(a, axis=1, keepdims=True),
                           axis=0, keepdims=True)

        def tanh_clamp(x):
            return t_cl * jnp.tanh(x * inv_t)

        def photo_pred(px, py, dem_p, dem_g):
            hd = jnp.abs(dem_p - dem_g)
            dem2 = jnp.where(hd < HEIGHT_TOLERANCE, dem_p, dem_g)
            lon_p, lat_p = _mercator2lonlat(px, py)
            pr, pc = _rpc_obj2photo(lon_p, lat_p, dem2)
            return pr, pc, hd

        zero = jnp.zeros((8, 128), f32)

        # ---- pass 1: means / valid-point sums ------------------------------
        def p1(jt, carry):
            j0 = pl.multiple_of(jt * tile, 128)
            px, py = load(0, j0), load(1, j0)
            dem_p, conf0 = load(2, j0), load(3, j0)
            pgx, pgy = load(4, j0), load(5, j0)
            dem_g, m = load(6, j0), load(7, j0)
            conf_adj = jnp.where(conf0 > 0.5, conf_hi, conf0)
            conf_adj = jnp.where(conf_adj < 0.5, conf_lo, conf_adj)
            valid0 = jnp.where(conf0 > 0.5, m, 0.0)
            pr, pc, _ = photo_pred(px, py, dem_p, dem_g)
            dxp, dyp = pr - pgx, pc - pgy
            tc_photo = tanh_clamp(jnp.sqrt(dxp * dxp + dyp * dyp))
            terms = (conf_adj * m, pgx * m, pgy * m, pr * m, pc * m,
                     valid0, tc_photo * valid0)
            return tuple(c + fold(q) for c, q in zip(carry, terms))

        a1 = jax.lax.fori_loop(0, nt, p1, (zero,) * 7)
        s1 = [rsum(a) for a in a1]
        conf_mean = s1[0] * inv_n
        mlx, mly = s1[1] * inv_n, s1[2] * inv_n
        mpx, mpy = s1[3] * inv_n, s1[4] * inv_n
        real_photo_loss = s1[6] / jnp.maximum(s1[5], _EPS)
        dmx, dmy = mpx - mlx, mpy - mly

        def conf_of(conf0, m):           # masked re-weighted confidence
            ca = jnp.where(conf0 > 0.5, conf_hi, conf0)
            ca = jnp.where(ca < 0.5, conf_lo, ca)
            return jnp.maximum(ca - conf_mean + 1.0, 0.0) * m

        # ---- pass 2: main losses + dis mean --------------------------------
        def p2(jt, carry):
            j0 = pl.multiple_of(jt * tile, 128)
            px, py = load(0, j0), load(1, j0)
            dem_p, conf0 = load(2, j0), load(3, j0)
            pgx, pgy = load(4, j0), load(5, j0)
            dem_g, m = load(6, j0), load(7, j0)
            conf_m = conf_of(conf0, m)
            lon_g, lat_g = _rpc_photo2obj(pgx, pgy, dem_g)
            gx, gy = _project_mercator(lon_g, lat_g)
            obj_dis = jnp.sqrt((px - gx) ** 2 + (py - gy) ** 2)
            pr, pc, hd = photo_pred(px, py, dem_p, dem_g)
            dxp, dyp = pr - pgx, pc - pgy
            photo_dis = jnp.sqrt(dxp * dxp + dyp * dyp)
            adx, ady = pgx - pr + dmx, pgy - pc + dmy
            dis = jnp.sqrt(adx * adx + ady * ady)
            terms = (obj_dis * conf_m, tanh_clamp(hd) * conf_m,
                     tanh_clamp(photo_dis) * conf_m,
                     tanh_clamp(dxp) * conf_m, tanh_clamp(dyp) * conf_m,
                     dis * m)
            return tuple(c + fold(q) for c, q in zip(carry, terms))

        a2 = jax.lax.fori_loop(0, nt, p2, (zero,) * 6)
        s2 = [rsum(a) for a in a2]
        loss_obj = s2[0] * inv_n
        loss_height = s2[1] * inv_n
        loss_photo = s2[2] * inv_n
        mbx, mby = s2[3] * inv_n, s2[4] * inv_n
        loss_bias = jnp.sqrt(mbx * mbx + mby * mby)
        dmean = s2[5] * inv_n

        # ---- pass 2b: two-pass unbiased variance of dis (cancellation-safe)
        def p2b(jt, carry):
            j0 = pl.multiple_of(jt * tile, 128)
            px, py = load(0, j0), load(1, j0)
            dem_p = load(2, j0)
            pgx, pgy = load(4, j0), load(5, j0)
            dem_g, m = load(6, j0), load(7, j0)
            pr, pc, _ = photo_pred(px, py, dem_p, dem_g)
            adx, ady = pgx - pr + dmx, pgy - pc + dmy
            dis = jnp.sqrt(adx * adx + ady * ady)
            dd = dis - dmean
            return carry + fold(dd * dd * m)

        a2b = jax.lax.fori_loop(0, nt, p2b, zero)
        dstd = jnp.sqrt(jnp.maximum(rsum(a2b) * inv_nm1, 0.0))
        thr = dmean + dstd

        # ---- pass 3: 0/1-weighted normal equations (== torch row select) ---
        def p3(jt, carry):
            j0 = pl.multiple_of(jt * tile, 128)
            px, py = load(0, j0), load(1, j0)
            dem_p, conf0 = load(2, j0), load(3, j0)
            pgx, pgy = load(4, j0), load(5, j0)
            dem_g, m = load(6, j0), load(7, j0)
            conf_m = conf_of(conf0, m)
            pr, pc, _ = photo_pred(px, py, dem_p, dem_g)
            adx, ady = pgx - pr + dmx, pgy - pc + dmy
            dis = jnp.sqrt(adx * adx + ady * ady)
            w = jnp.where((conf_m > 0.5) & (dis < thr), 1.0, 0.0)
            lxc, lyc = pgx - mlx, pgy - mly
            bxc, byc = pr - mpx, pc - mpy
            wlx, wly = w * lxc, w * lyc
            terms = (wlx * lxc, wlx * lyc, wlx,
                     wly * lyc, wly, w,
                     wlx * bxc, wly * bxc, w * bxc,
                     wlx * byc, wly * byc, w * byc)
            return tuple(c + fold(q) for c, q in zip(carry, terms))

        a3 = jax.lax.fori_loop(0, nt, p3, (zero,) * 12)
        s3 = [rsum(a) for a in a3]
        m00, m01, m02, m11, m12, m22 = s3[0], s3[1], s3[2], s3[3], s3[4], s3[5]
        rx0, rx1, rx2 = s3[6], s3[7], s3[8]
        ry0, ry1, ry2 = s3[9], s3[10], s3[11]
        det = (m00 * (m11 * m22 - m12 * m12)
               - m01 * (m01 * m22 - m12 * m02)
               + m02 * (m01 * m12 - m11 * m02))
        inv_det = 1.0 / jnp.where(jnp.abs(det) > _EPS, det, _EPS)
        i00 = (m11 * m22 - m12 * m12) * inv_det
        i01 = (m02 * m12 - m01 * m22) * inv_det
        i02 = (m01 * m12 - m02 * m11) * inv_det
        i11 = (m00 * m22 - m02 * m02) * inv_det
        i12 = (m02 * m01 - m00 * m12) * inv_det
        i22 = (m00 * m11 - m01 * m01) * inv_det
        T00 = i00 * rx0 + i01 * rx1 + i02 * rx2
        T10 = i01 * rx0 + i11 * rx1 + i12 * rx2
        T20 = i02 * rx0 + i12 * rx1 + i22 * rx2
        T01 = i00 * ry0 + i01 * ry1 + i02 * ry2
        T11 = i01 * ry0 + i11 * ry1 + i12 * ry2
        T21 = i02 * ry0 + i12 * ry1 + i22 * ry2

        # ---- pass 4: weighted affine residual ------------------------------
        def p4(jt, carry):
            j0 = pl.multiple_of(jt * tile, 128)
            px, py = load(0, j0), load(1, j0)
            dem_p, conf0 = load(2, j0), load(3, j0)
            pgx, pgy = load(4, j0), load(5, j0)
            dem_g, m = load(6, j0), load(7, j0)
            conf_m = conf_of(conf0, m)
            pr, pc, _ = photo_pred(px, py, dem_p, dem_g)
            adx, ady = pgx - pr + dmx, pgy - pc + dmy
            dis = jnp.sqrt(adx * adx + ady * ady)
            w = jnp.where((conf_m > 0.5) & (dis < thr), 1.0, 0.0)
            lxc, lyc = pgx - mlx, pgy - mly
            reg_x = T00 * lxc + T10 * lyc + T20 + mpx
            reg_y = T01 * lxc + T11 * lyc + T21 + mpy
            rx, ry = reg_x - pgx, reg_y - pgy
            return carry + fold(w * jnp.sqrt(rx * rx + ry * ry))

        a4 = jax.lax.fori_loop(0, nt, p4, zero)
        loss_affine = rsum(a4) / jnp.maximum(m22, _EPS)

        loss = (loss_obj + loss_height * LOSS_HEIGHT_WEIGHT + loss_photo
                + loss_bias + loss_affine)
        vals = (loss, loss_obj, loss_height, loss_photo, real_photo_loss,
                loss_bias, loss_affine)

        # tiny lane-dense epilogue: 7 scalars into lanes 0..6 of one row
        lanes = jax.lax.broadcasted_iota(jnp.int32, out_ref.shape, 1)
        acc = jnp.zeros(out_ref.shape, f32)
        for k, v in enumerate(vals):
            acc = acc + jnp.where(lanes == k, v, 0.0)
        out_ref[...] = acc

    return kernel


# --------------------------------------------------------------------------
def _plan(n):
    """Choose lanes-per-channel (nl) and in-kernel lane tile size."""
    nl = max(1, -(-n // 8))
    nl = -(-nl // 128) * 128
    if nl > LANE_TILE:
        nl = -(-nl // LANE_TILE) * LANE_TILE
        tile = LANE_TILE
    else:
        tile = nl
    return nl, tile


def _pack_inputs(pred, conf, photo_gt, dem_gt, nl):
    # TODO(synk): for very large N, produce channel-major inputs upstream so
    # this repacking pass over HBM disappears.
    f32 = jnp.float32  # TODO(synk): torch used float64; TPU has no f64 vectors.
    pred = jnp.asarray(pred, f32)
    conf = jnp.asarray(conf, f32).reshape(-1)
    photo_gt = jnp.asarray(photo_gt, f32)
    dem_gt = jnp.asarray(dem_gt, f32).reshape(-1)
    n = pred.shape[0]
    npad = 8 * nl

    def chan(x):
        return jnp.pad(x, (0, npad - n)).reshape(8, nl)

    mask = chan(jnp.ones((n,), f32))
    return jnp.concatenate(
        [chan(pred[:, 0]), chan(pred[:, 1]), chan(pred[:, 2]), chan(conf),
         chan(photo_gt[:, 1]), chan(photo_gt[:, 0]),   # photo_gt[:, [0,1]] swap
         chan(dem_gt), mask], axis=0)                  # (64, nl)


def criterion_train_one_img(epoch, max_epoch, pred, conf, photo_gt, dem_gt):
    """Returns (loss, loss_obj, loss_height, loss_photo, real_photo_loss,
    loss_bias, loss_photo_regularized) as float32 jnp scalars."""
    n = pred.shape[0]
    nl, tile = _plan(n)
    d = _pack_inputs(pred, conf, photo_gt, dem_gt, nl)

    # prog-derived constants computed once host-side, passed via SMEM.
    prog = jnp.float32(epoch) / jnp.float32(max_epoch)
    w_sc = jnp.sqrt(jnp.maximum(1.0 - prog * prog, 0.0))
    t_cl = w_sc * CLAMP_MAX + 1.0
    scal = jnp.stack([prog, 0.5 + prog * 0.4, 0.5 - prog * 0.4,
                      t_cl, 1.0 / t_cl,
                      jnp.float32(0.0), jnp.float32(0.0), jnp.float32(0.0)])

    out = pl.pallas_call(
        _make_kernel(n, nl, tile),
        out_shape=jax.ShapeDtypeStruct((1, 128), jnp.float32),
        in_specs=[pl.BlockSpec(memory_space=pltpu.MemorySpace.SMEM),   # scalars
                  pl.BlockSpec(memory_space=pltpu.MemorySpace.VMEM)],  # packed data
        out_specs=pl.BlockSpec(memory_space=pltpu.MemorySpace.VMEM),
        # headroom under v7x's 64 MiB physical VMEM; also raises v5e/v6e default.
        compiler_params=pltpu.CompilerParams(vmem_limit_bytes=64 * 1024 * 1024),
    )(scal, d)
    vals = out[0, :7]
    return tuple(vals[i] for i in range(7))


# --------------------------------------------------------------------------
def _reference(epoch, max_epoch, pred, conf, photo_gt, dem_gt):
    """Plain-JAX transcription of the torch forward (f32, same RPC stand-ins)."""
    f32 = jnp.float32
    pred = jnp.asarray(pred, f32)
    conf = jnp.asarray(conf, f32).reshape(-1)
    photo_gt = jnp.asarray(photo_gt, f32)
    dem_gt = jnp.asarray(dem_gt, f32).reshape(-1)
    n = pred.shape[0]
    prog = epoch / max_epoch
    valid0 = (conf > 0.5).astype(f32)
    conf = jnp.where(conf > 0.5, 0.5 + prog * 0.4, conf)
    conf = jnp.where(conf < 0.5, 0.5 - prog * 0.4, conf)
    conf = jnp.maximum(conf - conf.mean() + 1.0, 0.0)
    px, py, dem_pred = pred[:, 0], pred[:, 1], pred[:, 2]
    pgx, pgy = photo_gt[:, 1], photo_gt[:, 0]
    t_cl = math.sqrt(1.0 - prog * prog) * CLAMP_MAX + 1.0
    tc = lambda x: t_cl * jnp.tanh(x / t_cl)

    lon_g, lat_g = _rpc_photo2obj(pgx, pgy, dem_gt)
    gx, gy = _project_mercator(lon_g, lat_g)
    loss_obj = (jnp.sqrt((px - gx) ** 2 + (py - gy) ** 2) * conf).mean()

    hd = jnp.abs(dem_pred - dem_gt)
    loss_height = (tc(hd) * conf).mean()
    dem2 = jnp.where(hd < HEIGHT_TOLERANCE, dem_pred, dem_gt)
    lon_p, lat_p = _mercator2lonlat(px, py)
    pr, pc = _rpc_obj2photo(lon_p, lat_p, dem2)
    dxp, dyp = pr - pgx, pc - pgy
    photo_dis = jnp.sqrt(dxp ** 2 + dyp ** 2)
    loss_photo = (tc(photo_dis) * conf).mean()
    real_photo_loss = jnp.sum(tc(photo_dis) * valid0) / jnp.maximum(
        jnp.sum(valid0), 1e-20)
    loss_bias = jnp.sqrt((tc(dxp) * conf).mean() ** 2 +
                         (tc(dyp) * conf).mean() ** 2)

    # affine_loss(photo_gt, photo_pred, conf)
    local = jnp.stack([pgx, pgy], 1)
    predp = jnp.stack([pr, pc], 1)
    dis = jnp.linalg.norm(local + (predp.mean(0) - local.mean(0))[None] - predp,
                          axis=-1)
    dstd = jnp.sqrt(jnp.sum((dis - dis.mean()) ** 2) / (n - 1))
    w = ((conf > 0.5) & (dis < dis.mean() + dstd)).astype(f32)
    X = jnp.concatenate([local, jnp.ones((n, 1), f32)], 1)
    Xw = X * w[:, None]
    T = jnp.linalg.solve(Xw.T @ X, Xw.T @ predp)
    reg = X @ T
    loss_affine = jnp.sum(w * jnp.linalg.norm(reg - local, axis=-1)) / jnp.maximum(
        jnp.sum(w), 1e-20)
    loss = (loss_obj + LOSS_HEIGHT_WEIGHT * loss_height + loss_photo
            + loss_bias + loss_affine)
    return jnp.stack([loss, loss_obj, loss_height, loss_photo,
                      real_photo_loss, loss_bias, loss_affine])


# --------------------------------------------------------------------------
if __name__ == "__main__":
    key = jax.random.PRNGKey(0)
    k1, k2, k3, k4, k5, k6 = jax.random.split(key, 6)
    N = 256

    photo_gt = jax.random.normal(k1, (N, 2)) * 10.0
    dem_gt = 100.0 + jax.random.normal(k2, (N,)) * 3.0
    conf = jax.random.uniform(k3, (N,))

    # build pred near the ground-truth pipeline output (well-scaled losses)
    r, c = photo_gt[:, 1], photo_gt[:, 0]
    lon, lat = _rpc_photo2obj(r, c, dem_gt)
    mx, my = _project_mercator(lon, lat)
    pred = jnp.stack([mx + jax.random.normal(k4, (N,)),
                      my + jax.random.normal(k5, (N,)),
                      dem_gt + jax.random.normal(k6, (N,)) * 4.0], axis=1)

    epoch, max_epoch = 3, 10
    outs = jax.block_until_ready(
        criterion_train_one_img(epoch, max_epoch, pred, conf, photo_gt, dem_gt))
    got = jnp.stack(outs)
    ref = _reference(epoch, max_epoch, pred, conf, photo_gt, dem_gt)

    assert bool(jnp.all(jnp.isfinite(got))), got
    assert bool(jnp.allclose(got, ref, rtol=2e-2, atol=2e-2)), (got, ref)
    print("KERNEL_OK")
</pallas_src>

<mosaic_0001>
module attributes {stable_mosaic.version = 11 : i64} {
  func.func @kernel(%arg0: memref<8xf32, #tpu.memory_space<smem>>, %arg1: memref<64x128xf32, #tpu.memory_space<vmem>>, %arg2: memref<1x128xf32, #tpu.memory_space<vmem>>) attributes {dimension_semantics = [], scalar_prefetch = 0 : i64, scratch_operands = 0 : i64, tpu.core_type = #tpu.core_type<tc>} {
    %c1 = arith.constant 1 : index
    %0 = memref.load %arg0[%c1] : memref<8xf32, #tpu.memory_space<smem>>
    %c2 = arith.constant 2 : index
    %1 = memref.load %arg0[%c2] : memref<8xf32, #tpu.memory_space<smem>>
    %c3 = arith.constant 3 : index
    %2 = memref.load %arg0[%c3] : memref<8xf32, #tpu.memory_space<smem>>
    %c4 = arith.constant 4 : index
    %3 = memref.load %arg0[%c4] : memref<8xf32, #tpu.memory_space<smem>>
    %cst = arith.constant 0.000000e+00 : f32
    %4 = vector.broadcast %cst : f32 to vector<8x128xf32>
    %c0_i32 = arith.constant 0 : i32
    %c128_i32 = arith.constant 128 : i32
    %5 = arith.muli %c0_i32, %c128_i32 : i32
    %6 = tpu.assume_multiple %5, 128 : i32
    %c0 = arith.constant 0 : index
    %7 = arith.index_cast %6 : i32 to index
    %8 = vector.load %arg1[%c0, %7] : memref<64x128xf32, #tpu.memory_space<vmem>>, vector<8x128xf32>
    %c8 = arith.constant 8 : index
    %9 = arith.index_cast %6 : i32 to index
    %10 = vector.load %arg1[%c8, %9] : memref<64x128xf32, #tpu.memory_space<vmem>>, vector<8x128xf32>
    %c16 = arith.constant 16 : index
    %11 = arith.index_cast %6 : i32 to index
    %12 = vector.load %arg1[%c16, %11] : memref<64x128xf32, #tpu.memory_space<vmem>>, vector<8x128xf32>
    %c24 = arith.constant 24 : index
    %13 = arith.index_cast %6 : i32 to index
    %14 = vector.load %arg1[%c24, %13] : memref<64x128xf32, #tpu.memory_space<vmem>>, vector<8x128xf32>
    %c32 = arith.constant 32 : index
    %15 = arith.index_cast %6 : i32 to index
    %16 = vector.load %arg1[%c32, %15] : memref<64x128xf32, #tpu.memory_space<vmem>>, vector<8x128xf32>
    %c40 = arith.constant 40 : index
    %17 = arith.index_cast %6 : i32 to index
    %18 = vector.load %arg1[%c40, %17] : memref<64x128xf32, #tpu.memory_space<vmem>>, vector<8x128xf32>
    %c48 = arith.constant 48 : index
    %19 = arith.index_cast %6 : i32 to index
    %20 = vector.load %arg1[%c48, %19] : memref<64x128xf32, #tpu.memory_space<vmem>>, vector<8x128xf32>
    %c56 = arith.constant 56 : index
    %21 = arith.index_cast %6 : i32 to index
    %22 = vector.load %arg1[%c56, %21] : memref<64x128xf32, #tpu.memory_space<vmem>>, vector<8x128xf32>
    %cst_0 = arith.constant 5.000000e-01 : f32
    %23 = vector.broadcast %cst_0 : f32 to vector<8x128xf32>
    %24 = arith.cmpf ogt, %14, %23 : vector<8x128xf32>
    %25 = vector.broadcast %0 : f32 to vector<8x128xf32>
    %26 = arith.select %24, %25, %14 : vector<8x128xi1>, vector<8x128xf32>
    %cst_1 = arith.constant 5.000000e-01 : f32
    %27 = vector.broadcast %cst_1 : f32 to vector<8x128xf32>
    %28 = arith.cmpf olt, %26, %27 : vector<8x128xf32>
    %29 = vector.broadcast %1 : f32 to vector<8x128xf32>
    %30 = arith.select %28, %29, %26 : vector<8x128xi1>, vector<8x128xf32>
    %cst_2 = arith.constant 5.000000e-01 : f32
    %31 = vector.broadcast %cst_2 : f32 to vector<8x128xf32>
    %32 = arith.cmpf ogt, %14, %31 : vector<8x128xf32>
    %cst_3 = arith.constant 0.000000e+00 : f32
    %33 = vector.broadcast %cst_3 : f32 to vector<8x128xf32>
    %34 = arith.select %32, %22, %33 : vector<8x128xi1>, vector<8x128xf32>
    %35 = arith.subf %12, %20 : vector<8x128xf32>
    %36 = math.absf %35 : vector<8x128xf32>
    %cst_4 = arith.constant 5.000000e+00 : f32
    %37 = vector.broadcast %cst_4 : f32 to vector<8x128xf32>
    %38 = arith.cmpf olt, %36, %37 : vector<8x128xf32>
    %39 = arith.select %38, %12, %20 : vector<8x128xi1>, vector<8x128xf32>
    %cst_5 = arith.constant 1.000000e-03 : f32
    %40 = vector.broadcast %cst_5 : f32 to vector<8x128xf32>
    %41 = arith.mulf %8, %40 : vector<8x128xf32>
    %cst_6 = arith.constant 1.000000e-03 : f32
    %42 = vector.broadcast %cst_6 : f32 to vector<8x128xf32>
    %43 = arith.mulf %10, %42 : vector<8x128xf32>
    %cst_7 = arith.constant 1.200000e+02 : f32
    %44 = vector.broadcast %cst_7 : f32 to vector<8x128xf32>
    %45 = arith.subf %41, %44 : vector<8x128xf32>
    %cst_8 = arith.constant 9.99999974E-6 : f32
    %46 = vector.broadcast %cst_8 : f32 to vector<8x128xf32>
    %47 = arith.mulf %46, %39 : vector<8x128xf32>
    %48 = arith.subf %45, %47 : vector<8x128xf32>
    %cst_9 = arith.constant 3.000000e+01 : f32
    %49 = vector.broadcast %cst_9 : f32 to vector<8x128xf32>
    %50 = arith.subf %43, %49 : vector<8x128xf32>
    %cst_10 = arith.constant 2.000000e-05 : f32
    %51 = vector.broadcast %cst_10 : f32 to vector<8x128xf32>
    %52 = arith.mulf %51, %39 : vector<8x128xf32>
    %53 = arith.subf %50, %52 : vector<8x128xf32>
    %cst_11 = arith.constant 1.500000e-03 : f32
    %54 = vector.broadcast %cst_11 : f32 to vector<8x128xf32>
    %55 = arith.mulf %54, %48 : vector<8x128xf32>
    %cst_12 = arith.constant 5.000000e-04 : f32
    %56 = vector.broadcast %cst_12 : f32 to vector<8x128xf32>
    %57 = arith.mulf %56, %53 : vector<8x128xf32>
    %58 = arith.subf %55, %57 : vector<8x128xf32>
    %cst_13 = arith.constant 317460.313 : f32
    %59 = vector.broadcast %cst_13 : f32 to vector<8x128xf32>
    %60 = arith.mulf %58, %59 : vector<8x128xf32>
    %cst_14 = arith.constant 3.000000e-04 : f32
    %61 = vector.broadcast %cst_14 : f32 to vector<8x128xf32>
    %62 = arith.mulf %61, %48 : vector<8x128xf32>
    %cst_15 = arith.constant 2.000000e-03 : f32
    %63 = vector.broadcast %cst_15 : f32 to vector<8x128xf32>
    %64 = arith.mulf %63, %53 : vector<8x128xf32>
    %65 = arith.addf %62, %64 : vector<8x128xf32>
    %cst_16 = arith.constant 317460.313 : f32
    %66 = vector.broadcast %cst_16 : f32 to vector<8x128xf32>
    %67 = arith.mulf %65, %66 : vector<8x128xf32>
    %68 = arith.subf %60, %16 : vector<8x128xf32>
    %69 = arith.subf %67, %18 : vector<8x128xf32>
    %70 = arith.mulf %68, %68 : vector<8x128xf32>
    %71 = arith.mulf %69, %69 : vector<8x128xf32>
    %72 = arith.addf %70, %71 : vector<8x128xf32>
    %73 = math.sqrt %72 : vector<8x128xf32>
    %74 = vector.broadcast %3 : f32 to vector<8x128xf32>
    %75 = arith.mulf %73, %74 : vector<8x128xf32>
    %76 = math.tanh %75 : vector<8x128xf32>
    %77 = vector.broadcast %2 : f32 to vector<8x128xf32>
    %78 = arith.mulf %77, %76 : vector<8x128xf32>
    %79 = arith.mulf %30, %22 : vector<8x128xf32>
    %80 = arith.mulf %16, %22 : vector<8x128xf32>
    %81 = arith.mulf %18, %22 : vector<8x128xf32>
    %82 = arith.mulf %60, %22 : vector<8x128xf32>
    %83 = arith.mulf %67, %22 : vector<8x128xf32>
    %84 = arith.mulf %78, %34 : vector<8x128xf32>
    %85 = arith.addf %4, %79 : vector<8x128xf32>
    %86 = arith.addf %4, %80 : vector<8x128xf32>
    %87 = arith.addf %4, %81 : vector<8x128xf32>
    %88 = arith.addf %4, %82 : vector<8x128xf32>
    %89 = arith.addf %4, %83 : vector<8x128xf32>
    %90 = arith.addf %4, %34 : vector<8x128xf32>
    %91 = arith.addf %4, %84 : vector<8x128xf32>
    %c1_i32 = arith.constant 1 : i32
    %cst_17 = arith.constant dense<0.000000e+00> : vector<8xf32>
    %92 = vector.multi_reduction <add>, %85, %cst_17 [1] : vector<8x128xf32> to vector<8xf32>
    %93 = vector.shape_cast %92 : vector<8xf32> to vector<8x1xf32>
    %cst_18 = arith.constant dense<0.000000e+00> : vector<1xf32>
    %94 = vector.multi_reduction <add>, %93, %cst_18 [0] : vector<8x1xf32> to vector<1xf32>
    %95 = vector.shape_cast %94 : vector<1xf32> to vector<1x1xf32>
    %cst_19 = arith.constant dense<0.000000e+00> : vector<8xf32>
    %96 = vector.multi_reduction <add>, %86, %cst_19 [1] : vector<8x128xf32> to vector<8xf32>
    %97 = vector.shape_cast %96 : vector<8xf32> to vector<8x1xf32>
    %cst_20 = arith.constant dense<0.000000e+00> : vector<1xf32>
    %98 = vector.multi_reduction <add>, %97, %cst_20 [0] : vector<8x1xf32> to vector<1xf32>
    %99 = vector.shape_cast %98 : vector<1xf32> to vector<1x1xf32>
    %cst_21 = arith.constant dense<0.000000e+00> : vector<8xf32>
    %100 = vector.multi_reduction <add>, %87, %cst_21 [1] : vector<8x128xf32> to vector<8xf32>
    %101 = vector.shape_cast %100 : vector<8xf32> to vector<8x1xf32>
    %cst_22 = arith.constant dense<0.000000e+00> : vector<1xf32>
    %102 = vector.multi_reduction <add>, %101, %cst_22 [0] : vector<8x1xf32> to vector<1xf32>
    %103 = vector.shape_cast %102 : vector<1xf32> to vector<1x1xf32>
    %cst_23 = arith.constant dense<0.000000e+00> : vector<8xf32>
    %104 = vector.multi_reduction <add>, %88, %cst_23 [1] : vector<8x128xf32> to vector<8xf32>
    %105 = vector.shape_cast %104 : vector<8xf32> to vector<8x1xf32>
    %cst_24 = arith.constant dense<0.000000e+00> : vector<1xf32>
    %106 = vector.multi_reduction <add>, %105, %cst_24 [0] : vector<8x1xf32> to vector<1xf32>
    %107 = vector.shape_cast %106 : vector<1xf32> to vector<1x1xf32>
    %cst_25 = arith.constant dense<0.000000e+00> : vector<8xf32>
    %108 = vector.multi_reduction <add>, %89, %cst_25 [1] : vector<8x128xf32> to vector<8xf32>
    %109 = vector.shape_cast %108 : vector<8xf32> to vector<8x1xf32>
    %cst_26 = arith.constant dense<0.000000e+00> : vector<1xf32>
    %110 = vector.multi_reduction <add>, %109, %cst_26 [0] : vector<8x1xf32> to vector<1xf32>
    %111 = vector.shape_cast %110 : vector<1xf32> to vector<1x1xf32>
    %cst_27 = arith.constant dense<0.000000e+00> : vector<8xf32>
    %112 = vector.multi_reduction <add>, %90, %cst_27 [1] : vector<8x128xf32> to vector<8xf32>
    %113 = vector.shape_cast %112 : vector<8xf32> to vector<8x1xf32>
    %cst_28 = arith.constant dense<0.000000e+00> : vector<1xf32>
    %114 = vector.multi_reduction <add>, %113, %cst_28 [0] : vector<8x1xf32> to vector<1xf32>
    %115 = vector.shape_cast %114 : vector<1xf32> to vector<1x1xf32>
    %cst_29 = arith.constant dense<0.000000e+00> : vector<8xf32>
    %116 = vector.multi_reduction <add>, %91, %cst_29 [1] : vector<8x128xf32> to vector<8xf32>
    %117 = vector.shape_cast %116 : vector<8xf32> to vector<8x1xf32>
    %cst_30 = arith.constant dense<0.000000e+00> : vector<1xf32>
    %118 = vector.multi_reduction <add>, %117, %cst_30 [0] : vector<8x1xf32> to vector<1xf32>
    %119 = vector.shape_cast %118 : vector<1xf32> to vector<1x1xf32>
    %cst_31 = arith.constant 3.906250e-03 : f32
    %120 = vector.broadcast %cst_31 : f32 to vector<1x1xf32>
    %121 = arith.mulf %95, %120 : vector<1x1xf32>
    %cst_32 = arith.constant 3.906250e-03 : f32
    %122 = vector.broadcast %cst_32 : f32 to vector<1x1xf32>
    %123 = arith.mulf %99, %122 : vector<1x1xf32>
    %cst_33 = arith.constant 3.906250e-03 : f32
    %124 = vector.broadcast %cst_33 : f32 to vector<1x1xf32>
    %125 = arith.mulf %103, %124 : vector<1x1xf32>
    %cst_34 = arith.constant 3.906250e-03 : f32
    %126 = vector.broadcast %cst_34 : f32 to vector<1x1xf32>
    %127 = arith.mulf %107, %126 : vector<1x1xf32>
    %cst_35 = arith.constant 3.906250e-03 : f32
    %128 = vector.broadcast %cst_35 : f32 to vector<1x1xf32>
    %129 = arith.mulf %111, %128 : vector<1x1xf32>
    %cst_36 = arith.constant 9.99999968E-21 : f32
    %130 = vector.broadcast %cst_36 : f32 to vector<1x1xf32>
    %131 = arith.maximumf %115, %130 : vector<1x1xf32>
    %132 = arith.divf %119, %131 : vector<1x1xf32>
    %133 = arith.subf %127, %123 : vector<1x1xf32>
    %134 = arith.subf %129, %125 : vector<1x1xf32>
    %c0_i32_37 = arith.constant 0 : i32
    %c128_i32_38 = arith.constant 128 : i32
    %135 = arith.muli %c0_i32_37, %c128_i32_38 : i32
    %136 = tpu.assume_multiple %135, 128 : i32
    %c0_39 = arith.constant 0 : index
    %137 = arith.index_cast %136 : i32 to index
    %138 = vector.load %arg1[%c0_39, %137] : memref<64x128xf32, #tpu.memory_space<vmem>>, vector<8x128xf32>
    %c8_40 = arith.constant 8 : index
    %139 = arith.index_cast %136 : i32 to index
    %140 = vector.load %arg1[%c8_40, %139] : memref<64x128xf32, #tpu.memory_space<vmem>>, vector<8x128xf32>
    %c16_41 = arith.constant 16 : index
    %141 = arith.index_cast %136 : i32 to index
    %142 = vector.load %arg1[%c16_41, %141] : memref<64x128xf32, #tpu.memory_space<vmem>>, vector<8x128xf32>
    %c24_42 = arith.constant 24 : index
    %143 = arith.index_cast %136 : i32 to index
    %144 = vector.load %arg1[%c24_42, %143] : memref<64x128xf32, #tpu.memory_space<vmem>>, vector<8x128xf32>
    %c32_43 = arith.constant 32 : index
    %145 = arith.index_cast %136 : i32 to index
    %146 = vector.load %arg1[%c32_43, %145] : memref<64x128xf32, #tpu.memory_space<vmem>>, vector<8x128xf32>
    %c40_44 = arith.constant 40 : index
    %147 = arith.index_cast %136 : i32 to index
    %148 = vector.load %arg1[%c40_44, %147] : memref<64x128xf32, #tpu.memory_space<vmem>>, vector<8x128xf32>
    %c48_45 = arith.constant 48 : index
    %149 = arith.index_cast %136 : i32 to index
    %150 = vector.load %arg1[%c48_45, %149] : memref<64x128xf32, #tpu.memory_space<vmem>>, vector<8x128xf32>
    %c56_46 = arith.constant 56 : index
    %151 = arith.index_cast %136 : i32 to index
    %152 = vector.load %arg1[%c56_46, %151] : memref<64x128xf32, #tpu.memory_space<vmem>>, vector<8x128xf32>
    %cst_47 = arith.constant 5.000000e-01 : f32
    %153 = vector.broadcast %cst_47 : f32 to vector<8x128xf32>
    %154 = arith.cmpf ogt, %144, %153 : vector<8x128xf32>
    %155 = vector.broadcast %0 : f32 to vector<8x128xf32>
    %156 = arith.select %154, %155, %144 : vector<8x128xi1>, vector<8x128xf32>
    %cst_48 = arith.constant 5.000000e-01 : f32
    %157 = vector.broadcast %cst_48 : f32 to vector<8x128xf32>
    %158 = arith.cmpf olt, %156, %157 : vector<8x128xf32>
    %159 = vector.broadcast %1 : f32 to vector<8x128xf32>
    %160 = arith.select %158, %159, %156 : vector<8x128xi1>, vector<8x128xf32>
    %161 = vector.broadcast %121 : vector<1x1xf32> to vector<8x128xf32>
    %162 = arith.subf %160, %161 : vector<8x128xf32>
    %cst_49 = arith.constant 1.000000e+00 : f32
    %163 = vector.broadcast %cst_49 : f32 to vector<8x128xf32>
    %164 = arith.addf %162, %163 : vector<8x128xf32>
    %cst_50 = arith.constant 0.000000e+00 : f32
    %165 = vector.broadcast %cst_50 : f32 to vector<8x128xf32>
    %166 = arith.maximumf %164, %165 : vector<8x128xf32>
    %167 = arith.mulf %166, %152 : vector<8x128xf32>
    %cst_51 = arith.constant 2.000000e-03 : f32
    %168 = vector.broadcast %cst_51 : f32 to vector<8x128xf32>
    %169 = arith.mulf %168, %146 : vector<8x128xf32>
    %cst_52 = arith.constant 1.200000e+02 : f32
    %170 = vector.broadcast %cst_52 : f32 to vector<8x128xf32>
    %171 = arith.addf %170, %169 : vector<8x128xf32>
    %cst_53 = arith.constant 5.000000e-04 : f32
    %172 = vector.broadcast %cst_53 : f32 to vector<8x128xf32>
    %173 = arith.mulf %172, %148 : vector<8x128xf32>
    %174 = arith.addf %171, %173 : vector<8x128xf32>
    %cst_54 = arith.constant 9.99999974E-6 : f32
    %175 = vector.broadcast %cst_54 : f32 to vector<8x128xf32>
    %176 = arith.mulf %175, %150 : vector<8x128xf32>
    %177 = arith.addf %174, %176 : vector<8x128xf32>
    %cst_55 = arith.constant -3.000000e-04 : f32
    %178 = vector.broadcast %cst_55 : f32 to vector<8x128xf32>
    %179 = arith.mulf %178, %146 : vector<8x128xf32>
    %cst_56 = arith.constant 3.000000e+01 : f32
    %180 = vector.broadcast %cst_56 : f32 to vector<8x128xf32>
    %181 = arith.addf %180, %179 : vector<8x128xf32>
    %cst_57 = arith.constant 1.500000e-03 : f32
    %182 = vector.broadcast %cst_57 : f32 to vector<8x128xf32>
    %183 = arith.mulf %182, %148 : vector<8x128xf32>
    %184 = arith.addf %181, %183 : vector<8x128xf32>
    %cst_58 = arith.constant 2.000000e-05 : f32
    %185 = vector.broadcast %cst_58 : f32 to vector<8x128xf32>
    %186 = arith.mulf %185, %150 : vector<8x128xf32>
    %187 = arith.addf %184, %186 : vector<8x128xf32>
    %cst_59 = arith.constant 1.000000e+03 : f32
    %188 = vector.broadcast %cst_59 : f32 to vector<8x128xf32>
    %189 = arith.mulf %188, %177 : vector<8x128xf32>
    %cst_60 = arith.constant 1.000000e+03 : f32
    %190 = vector.broadcast %cst_60 : f32 to vector<8x128xf32>
    %191 = arith.mulf %190, %187 : vector<8x128xf32>
    %192 = arith.subf %138, %189 : vector<8x128xf32>
    %193 = arith.mulf %192, %192 : vector<8x128xf32>
    %194 = arith.subf %140, %191 : vector<8x128xf32>
    %195 = arith.mulf %194, %194 : vector<8x128xf32>
    %196 = arith.addf %193, %195 : vector<8x128xf32>
    %197 = math.sqrt %196 : vector<8x128xf32>
    %198 = arith.subf %142, %150 : vector<8x128xf32>
    %199 = math.absf %198 : vector<8x128xf32>
    %cst_61 = arith.constant 5.000000e+00 : f32
    %200 = vector.broadcast %cst_61 : f32 to vector<8x128xf32>
    %201 = arith.cmpf olt, %199, %200 : vector<8x128xf32>
    %202 = arith.select %201, %142, %150 : vector<8x128xi1>, vector<8x128xf32>
    %cst_62 = arith.constant 1.000000e-03 : f32
    %203 = vector.broadcast %cst_62 : f32 to vector<8x128xf32>
    %204 = arith.mulf %138, %203 : vector<8x128xf32>
    %cst_63 = arith.constant 1.000000e-03 : f32
    %205 = vector.broadcast %cst_63 : f32 to vector<8x128xf32>
    %206 = arith.mulf %140, %205 : vector<8x128xf32>
    %cst_64 = arith.constant 1.200000e+02 : f32
    %207 = vector.broadcast %cst_64 : f32 to vector<8x128xf32>
    %208 = arith.subf %204, %207 : vector<8x128xf32>
    %cst_65 = arith.constant 9.99999974E-6 : f32
    %209 = vector.broadcast %cst_65 : f32 to vector<8x128xf32>
    %210 = arith.mulf %209, %202 : vector<8x128xf32>
    %211 = arith.subf %208, %210 : vector<8x128xf32>
    %cst_66 = arith.constant 3.000000e+01 : f32
    %212 = vector.broadcast %cst_66 : f32 to vector<8x128xf32>
    %213 = arith.subf %206, %212 : vector<8x128xf32>
    %cst_67 = arith.constant 2.000000e-05 : f32
    %214 = vector.broadcast %cst_67 : f32 to vector<8x128xf32>
    %215 = arith.mulf %214, %202 : vector<8x128xf32>
    %216 = arith.subf %213, %215 : vector<8x128xf32>
    %cst_68 = arith.constant 1.500000e-03 : f32
    %217 = vector.broadcast %cst_68 : f32 to vector<8x128xf32>
    %218 = arith.mulf %217, %211 : vector<8x128xf32>
    %cst_69 = arith.constant 5.000000e-04 : f32
    %219 = vector.broadcast %cst_69 : f32 to vector<8x128xf32>
    %220 = arith.mulf %219, %216 : vector<8x128xf32>
    %221 = arith.subf %218, %220 : vector<8x128xf32>
    %cst_70 = arith.constant 317460.313 : f32
    %222 = vector.broadcast %cst_70 : f32 to vector<8x128xf32>
    %223 = arith.mulf %221, %222 : vector<8x128xf32>
    %cst_71 = arith.constant 3.000000e-04 : f32
    %224 = vector.broadcast %cst_71 : f32 to vector<8x128xf32>
    %225 = arith.mulf %224, %211 : vector<8x128xf32>
    %cst_72 = arith.constant 2.000000e-03 : f32
    %226 = vector.broadcast %cst_72 : f32 to vector<8x128xf32>
    %227 = arith.mulf %226, %216 : vector<8x128xf32>
    %228 = arith.addf %225, %227 : vector<8x128xf32>
    %cst_73 = arith.constant 317460.313 : f32
    %229 = vector.broadcast %cst_73 : f32 to vector<8x128xf32>
    %230 = arith.mulf %228, %229 : vector<8x128xf32>
    %231 = arith.subf %223, %146 : vector<8x128xf32>
    %232 = arith.subf %230, %148 : vector<8x128xf32>
    %233 = arith.mulf %231, %231 : vector<8x128xf32>
    %234 = arith.mulf %232, %232 : vector<8x128xf32>
    %235 = arith.addf %233, %234 : vector<8x128xf32>
    %236 = math.sqrt %235 : vector<8x128xf32>
    %237 = arith.subf %146, %223 : vector<8x128xf32>
    %238 = vector.broadcast %133 : vector<1x1xf32> to vector<8x128xf32>
    %239 = arith.addf %237, %238 : vector<8x128xf32>
    %240 = arith.subf %148, %230 : vector<8x128xf32>
    %241 = vector.broadcast %134 : vector<1x1xf32> to vector<8x128xf32>
    %242 = arith.addf %240, %241 : vector<8x128xf32>
    %243 = arith.mulf %239, %239 : vector<8x128xf32>
    %244 = arith.mulf %242, %242 : vector<8x128xf32>
    %245 = arith.addf %243, %244 : vector<8x128xf32>
    %246 = math.sqrt %245 : vector<8x128xf32>
    %247 = arith.mulf %197, %167 : vector<8x128xf32>
    %248 = vector.broadcast %3 : f32 to vector<8x128xf32>
    %249 = arith.mulf %199, %248 : vector<8x128xf32>
    %250 = math.tanh %249 : vector<8x128xf32>
    %251 = vector.broadcast %2 : f32 to vector<8x128xf32>
    %252 = arith.mulf %251, %250 : vector<8x128xf32>
    %253 = arith.mulf %252, %167 : vector<8x128xf32>
    %254 = vector.broadcast %3 : f32 to vector<8x128xf32>
    %255 = arith.mulf %236, %254 : vector<8x128xf32>
    %256 = math.tanh %255 : vector<8x128xf32>
    %257 = vector.broadcast %2 : f32 to vector<8x128xf32>
    %258 = arith.mulf %257, %256 : vector<8x128xf32>
    %259 = arith.mulf %258, %167 : vector<8x128xf32>
    %260 = vector.broadcast %3 : f32 to vector<8x128xf32>
    %261 = arith.mulf %231, %260 : vector<8x128xf32>
    %262 = math.tanh %261 : vector<8x128xf32>
    %263 = vector.broadcast %2 : f32 to vector<8x128xf32>
    %264 = arith.mulf %263, %262 : vector<8x128xf32>
    %265 = arith.mulf %264, %167 : vector<8x128xf32>
    %266 = vector.broadcast %3 : f32 to vector<8x128xf32>
    %267 = arith.mulf %232, %266 : vector<8x128xf32>
    %268 = math.tanh %267 : vector<8x128xf32>
    %269 = vector.broadcast %2 : f32 to vector<8x128xf32>
    %270 = arith.mulf %269, %268 : vector<8x128xf32>
    %271 = arith.mulf %270, %167 : vector<8x128xf32>
    %272 = arith.mulf %246, %152 : vector<8x128xf32>
    %273 = arith.addf %4, %247 : vector<8x128xf32>
    %274 = arith.addf %4, %253 : vector<8x128xf32>
    %275 = arith.addf %4, %259 : vector<8x128xf32>
    %276 = arith.addf %4, %265 : vector<8x128xf32>
    %277 = arith.addf %4, %271 : vector<8x128xf32>
    %278 = arith.addf %4, %272 : vector<8x128xf32>
    %c1_i32_74 = arith.constant 1 : i32
    %cst_75 = arith.constant dense<0.000000e+00> : vector<8xf32>
    %279 = vector.multi_reduction <add>, %273, %cst_75 [1] : vector<8x128xf32> to vector<8xf32>
    %280 = vector.shape_cast %279 : vector<8xf32> to vector<8x1xf32>
    %cst_76 = arith.constant dense<0.000000e+00> : vector<1xf32>
    %281 = vector.multi_reduction <add>, %280, %cst_76 [0] : vector<8x1xf32> to vector<1xf32>
    %282 = vector.shape_cast %281 : vector<1xf32> to vector<1x1xf32>
    %cst_77 = arith.constant dense<0.000000e+00> : vector<8xf32>
    %283 = vector.multi_reduction <add>, %274, %cst_77 [1] : vector<8x128xf32> to vector<8xf32>
    %284 = vector.shape_cast %283 : vector<8xf32> to vector<8x1xf32>
    %cst_78 = arith.constant dense<0.000000e+00> : vector<1xf32>
    %285 = vector.multi_reduction <add>, %284, %cst_78 [0] : vector<8x1xf32> to vector<1xf32>
    %286 = vector.shape_cast %285 : vector<1xf32> to vector<1x1xf32>
    %cst_79 = arith.constant dense<0.000000e+00> : vector<8xf32>
    %287 = vector.multi_reduction <add>, %275, %cst_79 [1] : vector<8x128xf32> to vector<8xf32>
    %288 = vector.shape_cast %287 : vector<8xf32> to vector<8x1xf32>
    %cst_80 = arith.constant dense<0.000000e+00> : vector<1xf32>
    %289 = vector.multi_reduction <add>, %288, %cst_80 [0] : vector<8x1xf32> to vector<1xf32>
    %290 = vector.shape_cast %289 : vector<1xf32> to vector<1x1xf32>
    %cst_81 = arith.constant dense<0.000000e+00> : vector<8xf32>
    %291 = vector.multi_reduction <add>, %276, %cst_81 [1] : vector<8x128xf32> to vector<8xf32>
    %292 = vector.shape_cast %291 : vector<8xf32> to vector<8x1xf32>
    %cst_82 = arith.constant dense<0.000000e+00> : vector<1xf32>
    %293 = vector.multi_reduction <add>, %292, %cst_82 [0] : vector<8x1xf32> to vector<1xf32>
    %294 = vector.shape_cast %293 : vector<1xf32> to vector<1x1xf32>
    %cst_83 = arith.constant dense<0.000000e+00> : vector<8xf32>
    %295 = vector.multi_reduction <add>, %277, %cst_83 [1] : vector<8x128xf32> to vector<8xf32>
    %296 = vector.shape_cast %295 : vector<8xf32> to vector<8x1xf32>
    %cst_84 = arith.constant dense<0.000000e+00> : vector<1xf32>
    %297 = vector.multi_reduction <add>, %296, %cst_84 [0] : vector<8x1xf32> to vector<1xf32>
    %298 = vector.shape_cast %297 : vector<1xf32> to vector<1x1xf32>
    %cst_85 = arith.constant dense<0.000000e+00> : vector<8xf32>
    %299 = vector.multi_reduction <add>, %278, %cst_85 [1] : vector<8x128xf32> to vector<8xf32>
    %300 = vector.shape_cast %299 : vector<8xf32> to vector<8x1xf32>
    %cst_86 = arith.constant dense<0.000000e+00> : vector<1xf32>
    %301 = vector.multi_reduction <add>, %300, %cst_86 [0] : vector<8x1xf32> to vector<1xf32>
    %302 = vector.shape_cast %301 : vector<1xf32> to vector<1x1xf32>
    %cst_87 = arith.constant 3.906250e-03 : f32
    %303 = vector.broadcast %cst_87 : f32 to vector<1x1xf32>
    %304 = arith.mulf %282, %303 : vector<1x1xf32>
    %cst_88 = arith.constant 3.906250e-03 : f32
    %305 = vector.broadcast %cst_88 : f32 to vector<1x1xf32>
    %306 = arith.mulf %286, %305 : vector<1x1xf32>
    %cst_89 = arith.constant 3.906250e-03 : f32
    %307 = vector.broadcast %cst_89 : f32 to vector<1x1xf32>
    %308 = arith.mulf %290, %307 : vector<1x1xf32>
    %cst_90 = arith.constant 3.906250e-03 : f32
    %309 = vector.broadcast %cst_90 : f32 to vector<1x1xf32>
    %310 = arith.mulf %294, %309 : vector<1x1xf32>
    %cst_91 = arith.constant 3.906250e-03 : f32
    %311 = vector.broadcast %cst_91 : f32 to vector<1x1xf32>
    %312 = arith.mulf %298, %311 : vector<1x1xf32>
    %313 = arith.mulf %310, %310 : vector<1x1xf32>
    %314 = arith.mulf %312, %312 : vector<1x1xf32>
    %315 = arith.addf %313, %314 : vector<1x1xf32>
    %316 = math.sqrt %315 : vector<1x1xf32>
    %cst_92 = arith.constant 3.906250e-03 : f32
    %317 = vector.broadcast %cst_92 : f32 to vector<1x1xf32>
    %318 = arith.mulf %302, %317 : vector<1x1xf32>
    %c0_i32_93 = arith.constant 0 : i32
    %c128_i32_94 = arith.constant 128 : i32
    %319 = arith.muli %c0_i32_93, %c128_i32_94 : i32
    %320 = tpu.assume_multiple %319, 128 : i32
    %c0_95 = arith.constant 0 : index
    %321 = arith.index_cast %320 : i32 to index
    %322 = vector.load %arg1[%c0_95, %321] : memref<64x128xf32, #tpu.memory_space<vmem>>, vector<8x128xf32>
    %c8_96 = arith.constant 8 : index
    %323 = arith.index_cast %320 : i32 to index
    %324 = vector.load %arg1[%c8_96, %323] : memref<64x128xf32, #tpu.memory_space<vmem>>, vector<8x128xf32>
    %c16_97 = arith.constant 16 : index
    %325 = arith.index_cast %320 : i32 to index
    %326 = vector.load %arg1[%c16_97, %325] : memref<64x128xf32, #tpu.memory_space<vmem>>, vector<8x128xf32>
    %c32_98 = arith.constant 32 : index
    %327 = arith.index_cast %320 : i32 to index
    %328 = vector.load %arg1[%c32_98, %327] : memref<64x128xf32, #tpu.memory_space<vmem>>, vector<8x128xf32>
    %c40_99 = arith.constant 40 : index
    %329 = arith.index_cast %320 : i32 to index
    %330 = vector.load %arg1[%c40_99, %329] : memref<64x128xf32, #tpu.memory_space<vmem>>, vector<8x128xf32>
    %c48_100 = arith.constant 48 : index
    %331 = arith.index_cast %320 : i32 to index
    %332 = vector.load %arg1[%c48_100, %331] : memref<64x128xf32, #tpu.memory_space<vmem>>, vector<8x128xf32>
    %c56_101 = arith.constant 56 : index
    %333 = arith.index_cast %320 : i32 to index
    %334 = vector.load %arg1[%c56_101, %333] : memref<64x128xf32, #tpu.memory_space<vmem>>, vector<8x128xf32>
    %335 = arith.subf %326, %332 : vector<8x128xf32>
    %336 = math.absf %335 : vector<8x128xf32>
    %cst_102 = arith.constant 5.000000e+00 : f32
    %337 = vector.broadcast %cst_102 : f32 to vector<8x128xf32>
    %338 = arith.cmpf olt, %336, %337 : vector<8x128xf32>
    %339 = arith.select %338, %326, %332 : vector<8x128xi1>, vector<8x128xf32>
    %cst_103 = arith.constant 1.000000e-03 : f32
    %340 = vector.broadcast %cst_103 : f32 to vector<8x128xf32>
    %341 = arith.mulf %322, %340 : vector<8x128xf32>
    %cst_104 = arith.constant 1.000000e-03 : f32
    %342 = vector.broadcast %cst_104 : f32 to vector<8x128xf32>
    %343 = arith.mulf %324, %342 : vector<8x128xf32>
    %cst_105 = arith.constant 1.200000e+02 : f32
    %344 = vector.broadcast %cst_105 : f32 to vector<8x128xf32>
    %345 = arith.subf %341, %344 : vector<8x128xf32>
    %cst_106 = arith.constant 9.99999974E-6 : f32
    %346 = vector.broadcast %cst_106 : f32 to vector<8x128xf32>
    %347 = arith.mulf %346, %339 : vector<8x128xf32>
    %348 = arith.subf %345, %347 : vector<8x128xf32>
    %cst_107 = arith.constant 3.000000e+01 : f32
    %349 = vector.broadcast %cst_107 : f32 to vector<8x128xf32>
    %350 = arith.subf %343, %349 : vector<8x128xf32>
    %cst_108 = arith.constant 2.000000e-05 : f32
    %351 = vector.broadcast %cst_108 : f32 to vector<8x128xf32>
    %352 = arith.mulf %351, %339 : vector<8x128xf32>
    %353 = arith.subf %350, %352 : vector<8x128xf32>
    %cst_109 = arith.constant 1.500000e-03 : f32
    %354 = vector.broadcast %cst_109 : f32 to vector<8x128xf32>
    %355 = arith.mulf %354, %348 : vector<8x128xf32>
    %cst_110 = arith.constant 5.000000e-04 : f32
    %356 = vector.broadcast %cst_110 : f32 to vector<8x128xf32>
    %357 = arith.mulf %356, %353 : vector<8x128xf32>
    %358 = arith.subf %355, %357 : vector<8x128xf32>
    %cst_111 = arith.constant 317460.313 : f32
    %359 = vector.broadcast %cst_111 : f32 to vector<8x128xf32>
    %360 = arith.mulf %358, %359 : vector<8x128xf32>
    %cst_112 = arith.constant 3.000000e-04 : f32
    %361 = vector.broadcast %cst_112 : f32 to vector<8x128xf32>
    %362 = arith.mulf %361, %348 : vector<8x128xf32>
    %cst_113 = arith.constant 2.000000e-03 : f32
    %363 = vector.broadcast %cst_113 : f32 to vector<8x128xf32>
    %364 = arith.mulf %363, %353 : vector<8x128xf32>
    %365 = arith.addf %362, %364 : vector<8x128xf32>
    %cst_114 = arith.constant 317460.313 : f32
    %366 = vector.broadcast %cst_114 : f32 to vector<8x128xf32>
    %367 = arith.mulf %365, %366 : vector<8x128xf32>
    %368 = arith.subf %328, %360 : vector<8x128xf32>
    %369 = vector.broadcast %133 : vector<1x1xf32> to vector<8x128xf32>
    %370 = arith.addf %368, %369 : vector<8x128xf32>
    %371 = arith.subf %330, %367 : vector<8x128xf32>
    %372 = vector.broadcast %134 : vector<1x1xf32> to vector<8x128xf32>
    %373 = arith.addf %371, %372 : vector<8x128xf32>
    %374 = arith.mulf %370, %370 : vector<8x128xf32>
    %375 = arith.mulf %373, %373 : vector<8x128xf32>
    %376 = arith.addf %374, %375 : vector<8x128xf32>
    %377 = math.sqrt %376 : vector<8x128xf32>
    %378 = vector.broadcast %318 : vector<1x1xf32> to vector<8x128xf32>
    %379 = arith.subf %377, %378 : vector<8x128xf32>
    %380 = arith.mulf %379, %379 : vector<8x128xf32>
    %381 = arith.mulf %380, %334 : vector<8x128xf32>
    %382 = arith.addf %4, %381 : vector<8x128xf32>
    %c1_i32_115 = arith.constant 1 : i32
    %cst_116 = arith.constant dense<0.000000e+00> : vector<8xf32>
    %383 = vector.multi_reduction <add>, %382, %cst_116 [1] : vector<8x128xf32> to vector<8xf32>
    %384 = vector.shape_cast %383 : vector<8xf32> to vector<8x1xf32>
    %cst_117 = arith.constant dense<0.000000e+00> : vector<1xf32>
    %385 = vector.multi_reduction <add>, %384, %cst_117 [0] : vector<8x1xf32> to vector<1xf32>
    %386 = vector.shape_cast %385 : vector<1xf32> to vector<1x1xf32>
    %cst_118 = arith.constant 0.00392156886 : f32
    %387 = vector.broadcast %cst_118 : f32 to vector<1x1xf32>
    %388 = arith.mulf %386, %387 : vector<1x1xf32>
    %cst_119 = arith.constant 0.000000e+00 : f32
    %389 = vector.broadcast %cst_119 : f32 to vector<1x1xf32>
    %390 = arith.maximumf %388, %389 : vector<1x1xf32>
    %391 = math.sqrt %390 : vector<1x1xf32>
    %392 = arith.addf %318, %391 : vector<1x1xf32>
    %c0_i32_120 = arith.constant 0 : i32
    %c128_i32_121 = arith.constant 128 : i32
    %393 = arith.muli %c0_i32_120, %c128_i32_121 : i32
    %394 = tpu.assume_multiple %393, 128 : i32
    %c0_122 = arith.constant 0 : index
    %395 = arith.index_cast %394 : i32 to index
    %396 = vector.load %arg1[%c0_122, %395] : memref<64x128xf32, #tpu.memory_space<vmem>>, vector<8x128xf32>
    %c8_123 = arith.constant 8 : index
    %397 = arith.index_cast %394 : i32 to index
    %398 = vector.load %arg1[%c8_123, %397] : memref<64x128xf32, #tpu.memory_space<vmem>>, vector<8x128xf32>
    %c16_124 = arith.constant 16 : index
    %399 = arith.index_cast %394 : i32 to index
    %400 = vector.load %arg1[%c16_124, %399] : memref<64x128xf32, #tpu.memory_space<vmem>>, vector<8x128xf32>
    %c24_125 = arith.constant 24 : index
    %401 = arith.index_cast %394 : i32 to index
    %402 = vector.load %arg1[%c24_125, %401] : memref<64x128xf32, #tpu.memory_space<vmem>>, vector<8x128xf32>
    %c32_126 = arith.constant 32 : index
    %403 = arith.index_cast %394 : i32 to index
    %404 = vector.load %arg1[%c32_126, %403] : memref<64x128xf32, #tpu.memory_space<vmem>>, vector<8x128xf32>
    %c40_127 = arith.constant 40 : index
    %405 = arith.index_cast %394 : i32 to index
    %406 = vector.load %arg1[%c40_127, %405] : memref<64x128xf32, #tpu.memory_space<vmem>>, vector<8x128xf32>
    %c48_128 = arith.constant 48 : index
    %407 = arith.index_cast %394 : i32 to index
    %408 = vector.load %arg1[%c48_128, %407] : memref<64x128xf32, #tpu.memory_space<vmem>>, vector<8x128xf32>
    %c56_129 = arith.constant 56 : index
    %409 = arith.index_cast %394 : i32 to index
    %410 = vector.load %arg1[%c56_129, %409] : memref<64x128xf32, #tpu.memory_space<vmem>>, vector<8x128xf32>
    %cst_130 = arith.constant 5.000000e-01 : f32
    %411 = vector.broadcast %cst_130 : f32 to vector<8x128xf32>
    %412 = arith.cmpf ogt, %402, %411 : vector<8x128xf32>
    %413 = vector.broadcast %0 : f32 to vector<8x128xf32>
    %414 = arith.select %412, %413, %402 : vector<8x128xi1>, vector<8x128xf32>
    %cst_131 = arith.constant 5.000000e-01 : f32
    %415 = vector.broadcast %cst_131 : f32 to vector<8x128xf32>
    %416 = arith.cmpf olt, %414, %415 : vector<8x128xf32>
    %417 = vector.broadcast %1 : f32 to vector<8x128xf32>
    %418 = arith.select %416, %417, %414 : vector<8x128xi1>, vector<8x128xf32>
    %419 = vector.broadcast %121 : vector<1x1xf32> to vector<8x128xf32>
    %420 = arith.subf %418, %419 : vector<8x128xf32>
    %cst_132 = arith.constant 1.000000e+00 : f32
    %421 = vector.broadcast %cst_132 : f32 to vector<8x128xf32>
    %422 = arith.addf %420, %421 : vector<8x128xf32>
    %cst_133 = arith.constant 0.000000e+00 : f32
    %423 = vector.broadcast %cst_133 : f32 to vector<8x128xf32>
    %424 = arith.maximumf %422, %423 : vector<8x128xf32>
    %425 = arith.mulf %424, %410 : vector<8x128xf32>
    %426 = arith.subf %400, %408 : vector<8x128xf32>
    %427 = math.absf %426 : vector<8x128xf32>
    %cst_134 = arith.constant 5.000000e+00 : f32
    %428 = vector.broadcast %cst_134 : f32 to vector<8x128xf32>
    %429 = arith.cmpf olt, %427, %428 : vector<8x128xf32>
    %430 = arith.select %429, %400, %408 : vector<8x128xi1>, vector<8x128xf32>
    %cst_135 = arith.constant 1.000000e-03 : f32
    %431 = vector.broadcast %cst_135 : f32 to vector<8x128xf32>
    %432 = arith.mulf %396, %431 : vector<8x128xf32>
    %cst_136 = arith.constant 1.000000e-03 : f32
    %433 = vector.broadcast %cst_136 : f32 to vector<8x128xf32>
    %434 = arith.mulf %398, %433 : vector<8x128xf32>
    %cst_137 = arith.constant 1.200000e+02 : f32
    %435 = vector.broadcast %cst_137 : f32 to vector<8x128xf32>
    %436 = arith.subf %432, %435 : vector<8x128xf32>
    %cst_138 = arith.constant 9.99999974E-6 : f32
    %437 = vector.broadcast %cst_138 : f32 to vector<8x128xf32>
    %438 = arith.mulf %437, %430 : vector<8x128xf32>
    %439 = arith.subf %436, %438 : vector<8x128xf32>
    %cst_139 = arith.constant 3.000000e+01 : f32
    %440 = vector.broadcast %cst_139 : f32 to vector<8x128xf32>
    %441 = arith.subf %434, %440 : vector<8x128xf32>
    %cst_140 = arith.constant 2.000000e-05 : f32
    %442 = vector.broadcast %cst_140 : f32 to vector<8x128xf32>
    %443 = arith.mulf %442, %430 : vector<8x128xf32>
    %444 = arith.subf %441, %443 : vector<8x128xf32>
    %cst_141 = arith.constant 1.500000e-03 : f32
    %445 = vector.broadcast %cst_141 : f32 to vector<8x128xf32>
    %446 = arith.mulf %445, %439 : vector<8x128xf32>
    %cst_142 = arith.constant 5.000000e-04 : f32
    %447 = vector.broadcast %cst_142 : f32 to vector<8x128xf32>
    %448 = arith.mulf %447, %444 : vector<8x128xf32>
    %449 = arith.subf %446, %448 : vector<8x128xf32>
    %cst_143 = arith.constant 317460.313 : f32
    %450 = vector.broadcast %cst_143 : f32 to vector<8x128xf32>
    %451 = arith.mulf %449, %450 : vector<8x128xf32>
    %cst_144 = arith.constant 3.000000e-04 : f32
    %452 = vector.broadcast %cst_144 : f32 to vector<8x128xf32>
    %453 = arith.mulf %452, %439 : vector<8x128xf32>
    %cst_145 = arith.constant 2.000000e-03 : f32
    %454 = vector.broadcast %cst_145 : f32 to vector<8x128xf32>
    %455 = arith.mulf %454, %444 : vector<8x128xf32>
    %456 = arith.addf %453, %455 : vector<8x128xf32>
    %cst_146 = arith.constant 317460.313 : f32
    %457 = vector.broadcast %cst_146 : f32 to vector<8x128xf32>
    %458 = arith.mulf %456, %457 : vector<8x128xf32>
    %459 = arith.subf %404, %451 : vector<8x128xf32>
    %460 = vector.broadcast %133 : vector<1x1xf32> to vector<8x128xf32>
    %461 = arith.addf %459, %460 : vector<8x128xf32>
    %462 = arith.subf %406, %458 : vector<8x128xf32>
    %463 = vector.broadcast %134 : vector<1x1xf32> to vector<8x128xf32>
    %464 = arith.addf %462, %463 : vector<8x128xf32>
    %465 = arith.mulf %461, %461 : vector<8x128xf32>
    %466 = arith.mulf %464, %464 : vector<8x128xf32>
    %467 = arith.addf %465, %466 : vector<8x128xf32>
    %468 = math.sqrt %467 : vector<8x128xf32>
    %cst_147 = arith.constant 5.000000e-01 : f32
    %469 = vector.broadcast %cst_147 : f32 to vector<8x128xf32>
    %470 = arith.cmpf ogt, %425, %469 : vector<8x128xf32>
    %471 = vector.broadcast %392 : vector<1x1xf32> to vector<8x128xf32>
    %472 = arith.cmpf olt, %468, %471 : vector<8x128xf32>
    %473 = arith.andi %470, %472 : vector<8x128xi1>
    %cst_148 = arith.constant 1.000000e+00 : f32
    %cst_149 = arith.constant 0.000000e+00 : f32
    %474 = vector.broadcast %cst_148 : f32 to vector<8x128xf32>
    %475 = vector.broadcast %cst_149 : f32 to vector<8x128xf32>
    %476 = arith.select %473, %474, %475 : vector<8x128xi1>, vector<8x128xf32>
    %477 = vector.broadcast %123 : vector<1x1xf32> to vector<8x128xf32>
    %478 = arith.subf %404, %477 : vector<8x128xf32>
    %479 = vector.broadcast %125 : vector<1x1xf32> to vector<8x128xf32>
    %480 = arith.subf %406, %479 : vector<8x128xf32>
    %481 = vector.broadcast %127 : vector<1x1xf32> to vector<8x128xf32>
    %482 = arith.subf %451, %481 : vector<8x128xf32>
    %483 = vector.broadcast %129 : vector<1x1xf32> to vector<8x128xf32>
    %484 = arith.subf %458, %483 : vector<8x128xf32>
    %485 = arith.mulf %476, %478 : vector<8x128xf32>
    %486 = arith.mulf %476, %480 : vector<8x128xf32>
    %487 = arith.mulf %485, %478 : vector<8x128xf32>
    %488 = arith.mulf %485, %480 : vector<8x128xf32>
    %489 = arith.mulf %486, %480 : vector<8x128xf32>
    %490 = arith.mulf %485, %482 : vector<8x128xf32>
    %491 = arith.mulf %486, %482 : vector<8x128xf32>
    %492 = arith.mulf %476, %482 : vector<8x128xf32>
    %493 = arith.mulf %485, %484 : vector<8x128xf32>
    %494 = arith.mulf %486, %484 : vector<8x128xf32>
    %495 = arith.mulf %476, %484 : vector<8x128xf32>
    %496 = arith.addf %4, %487 : vector<8x128xf32>
    %497 = arith.addf %4, %488 : vector<8x128xf32>
    %498 = arith.addf %4, %485 : vector<8x128xf32>
    %499 = arith.addf %4, %489 : vector<8x128xf32>
    %500 = arith.addf %4, %486 : vector<8x128xf32>
    %501 = arith.addf %4, %476 : vector<8x128xf32>
    %502 = arith.addf %4, %490 : vector<8x128xf32>
    %503 = arith.addf %4, %491 : vector<8x128xf32>
    %504 = arith.addf %4, %492 : vector<8x128xf32>
    %505 = arith.addf %4, %493 : vector<8x128xf32>
    %506 = arith.addf %4, %494 : vector<8x128xf32>
    %507 = arith.addf %4, %495 : vector<8x128xf32>
    %c1_i32_150 = arith.constant 1 : i32
    %cst_151 = arith.constant dense<0.000000e+00> : vector<8xf32>
    %508 = vector.multi_reduction <add>, %496, %cst_151 [1] : vector<8x128xf32> to vector<8xf32>
    %509 = vector.shape_cast %508 : vector<8xf32> to vector<8x1xf32>
    %cst_152 = arith.constant dense<0.000000e+00> : vector<1xf32>
    %510 = vector.multi_reduction <add>, %509, %cst_152 [0] : vector<8x1xf32> to vector<1xf32>
    %511 = vector.shape_cast %510 : vector<1xf32> to vector<1x1xf32>
    %cst_153 = arith.constant dense<0.000000e+00> : vector<8xf32>
    %512 = vector.multi_reduction <add>, %497, %cst_153 [1] : vector<8x128xf32> to vector<8xf32>
    %513 = vector.shape_cast %512 : vector<8xf32> to vector<8x1xf32>
    %cst_154 = arith.constant dense<0.000000e+00> : vector<1xf32>
    %514 = vector.multi_reduction <add>, %513, %cst_154 [0] : vector<8x1xf32> to vector<1xf32>
    %515 = vector.shape_cast %514 : vector<1xf32> to vector<1x1xf32>
    %cst_155 = arith.constant dense<0.000000e+00> : vector<8xf32>
    %516 = vector.multi_reduction <add>, %498, %cst_155 [1] : vector<8x128xf32> to vector<8xf32>
    %517 = vector.shape_cast %516 : vector<8xf32> to vector<8x1xf32>
    %cst_156 = arith.constant dense<0.000000e+00> : vector<1xf32>
    %518 = vector.multi_reduction <add>, %517, %cst_156 [0] : vector<8x1xf32> to vector<1xf32>
    %519 = vector.shape_cast %518 : vector<1xf32> to vector<1x1xf32>
    %cst_157 = arith.constant dense<0.000000e+00> : vector<8xf32>
    %520 = vector.multi_reduction <add>, %499, %cst_157 [1] : vector<8x128xf32> to vector<8xf32>
    %521 = vector.shape_cast %520 : vector<8xf32> to vector<8x1xf32>
    %cst_158 = arith.constant dense<0.000000e+00> : vector<1xf32>
    %522 = vector.multi_reduction <add>, %521, %cst_158 [0] : vector<8x1xf32> to vector<1xf32>
    %523 = vector.shape_cast %522 : vector<1xf32> to vector<1x1xf32>
    %cst_159 = arith.constant dense<0.000000e+00> : vector<8xf32>
    %524 = vector.multi_reduction <add>, %500, %cst_159 [1] : vector<8x128xf32> to vector<8xf32>
    %525 = vector.shape_cast %524 : vector<8xf32> to vector<8x1xf32>
    %cst_160 = arith.constant dense<0.000000e+00> : vector<1xf32>
    %526 = vector.multi_reduction <add>, %525, %cst_160 [0] : vector<8x1xf32> to vector<1xf32>
    %527 = vector.shape_cast %526 : vector<1xf32> to vector<1x1xf32>
    %cst_161 = arith.constant dense<0.000000e+00> : vector<8xf32>
    %528 = vector.multi_reduction <add>, %501, %cst_161 [1] : vector<8x128xf32> to vector<8xf32>
    %529 = vector.shape_cast %528 : vector<8xf32> to vector<8x1xf32>
    %cst_162 = arith.constant dense<0.000000e+00> : vector<1xf32>
    %530 = vector.multi_reduction <add>, %529, %cst_162 [0] : vector<8x1xf32> to vector<1xf32>
    %531 = vector.shape_cast %530 : vector<1xf32> to vector<1x1xf32>
    %cst_163 = arith.constant dense<0.000000e+00> : vector<8xf32>
    %532 = vector.multi_reduction <add>, %502, %cst_163 [1] : vector<8x128xf32> to vector<8xf32>
    %533 = vector.shape_cast %532 : vector<8xf32> to vector<8x1xf32>
    %cst_164 = arith.constant dense<0.000000e+00> : vector<1xf32>
    %534 = vector.multi_reduction <add>, %533, %cst_164 [0] : vector<8x1xf32> to vector<1xf32>
    %535 = vector.shape_cast %534 : vector<1xf32> to vector<1x1xf32>
    %cst_165 = arith.constant dense<0.000000e+00> : vector<8xf32>
    %536 = vector.multi_reduction <add>, %503, %cst_165 [1] : vector<8x128xf32> to vector<8xf32>
    %537 = vector.shape_cast %536 : vector<8xf32> to vector<8x1xf32>
    %cst_166 = arith.constant dense<0.000000e+00> : vector<1xf32>
    %538 = vector.multi_reduction <add>, %537, %cst_166 [0] : vector<8x1xf32> to vector<1xf32>
    %539 = vector.shape_cast %538 : vector<1xf32> to vector<1x1xf32>
    %cst_167 = arith.constant dense<0.000000e+00> : vector<8xf32>
    %540 = vector.multi_reduction <add>, %504, %cst_167 [1] : vector<8x128xf32> to vector<8xf32>
    %541 = vector.shape_cast %540 : vector<8xf32> to vector<8x1xf32>
    %cst_168 = arith.constant dense<0.000000e+00> : vector<1xf32>
    %542 = vector.multi_reduction <add>, %541, %cst_168 [0] : vector<8x1xf32> to vector<1xf32>
    %543 = vector.shape_cast %542 : vector<1xf32> to vector<1x1xf32>
    %cst_169 = arith.constant dense<0.000000e+00> : vector<8xf32>
    %544 = vector.multi_reduction <add>, %505, %cst_169 [1] : vector<8x128xf32> to vector<8xf32>
    %545 = vector.shape_cast %544 : vector<8xf32> to vector<8x1xf32>
    %cst_170 = arith.constant dense<0.000000e+00> : vector<1xf32>
    %546 = vector.multi_reduction <add>, %545, %cst_170 [0] : vector<8x1xf32> to vector<1xf32>
    %547 = vector.shape_cast %546 : vector<1xf32> to vector<1x1xf32>
    %cst_171 = arith.constant dense<0.000000e+00> : vector<8xf32>
    %548 = vector.multi_reduction <add>, %506, %cst_171 [1] : vector<8x128xf32> to vector<8xf32>
    %549 = vector.shape_cast %548 : vector<8xf32> to vector<8x1xf32>
    %cst_172 = arith.constant dense<0.000000e+00> : vector<1xf32>
    %550 = vector.multi_reduction <add>, %549, %cst_172 [0] : vector<8x1xf32> to vector<1xf32>
    %551 = vector.shape_cast %550 : vector<1xf32> to vector<1x1xf32>
    %cst_173 = arith.constant dense<0.000000e+00> : vector<8xf32>
    %552 = vector.multi_reduction <add>, %507, %cst_173 [1] : vector<8x128xf32> to vector<8xf32>
    %553 = vector.shape_cast %552 : vector<8xf32> to vector<8x1xf32>
    %cst_174 = arith.constant dense<0.000000e+00> : vector<1xf32>
    %554 = vector.multi_reduction <add>, %553, %cst_174 [0] : vector<8x1xf32> to vector<1xf32>
    %555 = vector.shape_cast %554 : vector<1xf32> to vector<1x1xf32>
    %556 = arith.mulf %523, %531 : vector<1x1xf32>
    %557 = arith.mulf %527, %527 : vector<1x1xf32>
    %558 = arith.subf %556, %557 : vector<1x1xf32>
    %559 = arith.mulf %511, %558 : vector<1x1xf32>
    %560 = arith.mulf %515, %531 : vector<1x1xf32>
    %561 = arith.mulf %527, %519 : vector<1x1xf32>
    %562 = arith.subf %560, %561 : vector<1x1xf32>
    %563 = arith.mulf %515, %562 : vector<1x1xf32>
    %564 = arith.subf %559, %563 : vector<1x1xf32>
    %565 = arith.mulf %515, %527 : vector<1x1xf32>
    %566 = arith.mulf %523, %519 : vector<1x1xf32>
    %567 = arith.subf %565, %566 : vector<1x1xf32>
    %568 = arith.mulf %519, %567 : vector<1x1xf32>
    %569 = arith.addf %564, %568 : vector<1x1xf32>
    %570 = math.absf %569 : vector<1x1xf32>
    %cst_175 = arith.constant 9.99999968E-21 : f32
    %571 = vector.broadcast %cst_175 : f32 to vector<1x1xf32>
    %572 = arith.cmpf ogt, %570, %571 : vector<1x1xf32>
    %cst_176 = arith.constant 9.99999968E-21 : f32
    %573 = vector.broadcast %cst_176 : f32 to vector<1x1xf32>
    %574 = arith.select %572, %569, %573 : vector<1x1xi1>, vector<1x1xf32>
    %cst_177 = arith.constant 1.000000e+00 : f32
    %575 = vector.broadcast %cst_177 : f32 to vector<1x1xf32>
    %576 = arith.divf %575, %574 : vector<1x1xf32>
    %577 = arith.mulf %523, %531 : vector<1x1xf32>
    %578 = arith.mulf %527, %527 : vector<1x1xf32>
    %579 = arith.subf %577, %578 : vector<1x1xf32>
    %580 = arith.mulf %579, %576 : vector<1x1xf32>
    %581 = arith.mulf %519, %527 : vector<1x1xf32>
    %582 = arith.mulf %515, %531 : vector<1x1xf32>
    %583 = arith.subf %581, %582 : vector<1x1xf32>
    %584 = arith.mulf %583, %576 : vector<1x1xf32>
    %585 = arith.mulf %515, %527 : vector<1x1xf32>
    %586 = arith.mulf %519, %523 : vector<1x1xf32>
    %587 = arith.subf %585, %586 : vector<1x1xf32>
    %588 = arith.mulf %587, %576 : vector<1x1xf32>
    %589 = arith.mulf %511, %531 : vector<1x1xf32>
    %590 = arith.mulf %519, %519 : vector<1x1xf32>
    %591 = arith.subf %589, %590 : vector<1x1xf32>
    %592 = arith.mulf %591, %576 : vector<1x1xf32>
    %593 = arith.mulf %519, %515 : vector<1x1xf32>
    %594 = arith.mulf %511, %527 : vector<1x1xf32>
    %595 = arith.subf %593, %594 : vector<1x1xf32>
    %596 = arith.mulf %595, %576 : vector<1x1xf32>
    %597 = arith.mulf %511, %523 : vector<1x1xf32>
    %598 = arith.mulf %515, %515 : vector<1x1xf32>
    %599 = arith.subf %597, %598 : vector<1x1xf32>
    %600 = arith.mulf %599, %576 : vector<1x1xf32>
    %601 = arith.mulf %580, %535 : vector<1x1xf32>
    %602 = arith.mulf %584, %539 : vector<1x1xf32>
    %603 = arith.addf %601, %602 : vector<1x1xf32>
    %604 = arith.mulf %588, %543 : vector<1x1xf32>
    %605 = arith.addf %603, %604 : vector<1x1xf32>
    %606 = arith.mulf %584, %535 : vector<1x1xf32>
    %607 = arith.mulf %592, %539 : vector<1x1xf32>
    %608 = arith.addf %606, %607 : vector<1x1xf32>
    %609 = arith.mulf %596, %543 : vector<1x1xf32>
    %610 = arith.addf %608, %609 : vector<1x1xf32>
    %611 = arith.mulf %588, %535 : vector<1x1xf32>
    %612 = arith.mulf %596, %539 : vector<1x1xf32>
    %613 = arith.addf %611, %612 : vector<1x1xf32>
    %614 = arith.mulf %600, %543 : vector<1x1xf32>
    %615 = arith.addf %613, %614 : vector<1x1xf32>
    %616 = arith.mulf %580, %547 : vector<1x1xf32>
    %617 = arith.mulf %584, %551 : vector<1x1xf32>
    %618 = arith.addf %616, %617 : vector<1x1xf32>
    %619 = arith.mulf %588, %555 : vector<1x1xf32>
    %620 = arith.addf %618, %619 : vector<1x1xf32>
    %621 = arith.mulf %584, %547 : vector<1x1xf32>
    %622 = arith.mulf %592, %551 : vector<1x1xf32>
    %623 = arith.addf %621, %622 : vector<1x1xf32>
    %624 = arith.mulf %596, %555 : vector<1x1xf32>
    %625 = arith.addf %623, %624 : vector<1x1xf32>
    %626 = arith.mulf %588, %547 : vector<1x1xf32>
    %627 = arith.mulf %596, %551 : vector<1x1xf32>
    %628 = arith.addf %626, %627 : vector<1x1xf32>
    %629 = arith.mulf %600, %555 : vector<1x1xf32>
    %630 = arith.addf %628, %629 : vector<1x1xf32>
    %c0_i32_178 = arith.constant 0 : i32
    %c128_i32_179 = arith.constant 128 : i32
    %631 = arith.muli %c0_i32_178, %c128_i32_179 : i32
    %632 = tpu.assume_multiple %631, 128 : i32
    %c0_180 = arith.constant 0 : index
    %633 = arith.index_cast %632 : i32 to index
    %634 = vector.load %arg1[%c0_180, %633] : memref<64x128xf32, #tpu.memory_space<vmem>>, vector<8x128xf32>
    %c8_181 = arith.constant 8 : index
    %635 = arith.index_cast %632 : i32 to index
    %636 = vector.load %arg1[%c8_181, %635] : memref<64x128xf32, #tpu.memory_space<vmem>>, vector<8x128xf32>
    %c16_182 = arith.constant 16 : index
    %637 = arith.index_cast %632 : i32 to index
    %638 = vector.load %arg1[%c16_182, %637] : memref<64x128xf32, #tpu.memory_space<vmem>>, vector<8x128xf32>
    %c24_183 = arith.constant 24 : index
    %639 = arith.index_cast %632 : i32 to index
    %640 = vector.load %arg1[%c24_183, %639] : memref<64x128xf32, #tpu.memory_space<vmem>>, vector<8x128xf32>
    %c32_184 = arith.constant 32 : index
    %641 = arith.index_cast %632 : i32 to index
    %642 = vector.load %arg1[%c32_184, %641] : memref<64x128xf32, #tpu.memory_space<vmem>>, vector<8x128xf32>
    %c40_185 = arith.constant 40 : index
    %643 = arith.index_cast %632 : i32 to index
    %644 = vector.load %arg1[%c40_185, %643] : memref<64x128xf32, #tpu.memory_space<vmem>>, vector<8x128xf32>
    %c48_186 = arith.constant 48 : index
    %645 = arith.index_cast %632 : i32 to index
    %646 = vector.load %arg1[%c48_186, %645] : memref<64x128xf32, #tpu.memory_space<vmem>>, vector<8x128xf32>
    %c56_187 = arith.constant 56 : index
    %647 = arith.index_cast %632 : i32 to index
    %648 = vector.load %arg1[%c56_187, %647] : memref<64x128xf32, #tpu.memory_space<vmem>>, vector<8x128xf32>
    %cst_188 = arith.constant 5.000000e-01 : f32
    %649 = vector.broadcast %cst_188 : f32 to vector<8x128xf32>
    %650 = arith.cmpf ogt, %640, %649 : vector<8x128xf32>
    %651 = vector.broadcast %0 : f32 to vector<8x128xf32>
    %652 = arith.select %650, %651, %640 : vector<8x128xi1>, vector<8x128xf32>
    %cst_189 = arith.constant 5.000000e-01 : f32
    %653 = vector.broadcast %cst_189 : f32 to vector<8x128xf32>
    %654 = arith.cmpf olt, %652, %653 : vector<8x128xf32>
    %655 = vector.broadcast %1 : f32 to vector<8x128xf32>
    %656 = arith.select %654, %655, %652 : vector<8x128xi1>, vector<8x128xf32>
    %657 = vector.broadcast %121 : vector<1x1xf32> to vector<8x128xf32>
    %658 = arith.subf %656, %657 : vector<8x128xf32>
    %cst_190 = arith.constant 1.000000e+00 : f32
    %659 = vector.broadcast %cst_190 : f32 to vector<8x128xf32>
    %660 = arith.addf %658, %659 : vector<8x128xf32>
    %cst_191 = arith.constant 0.000000e+00 : f32
    %661 = vector.broadcast %cst_191 : f32 to vector<8x128xf32>
    %662 = arith.maximumf %660, %661 : vector<8x128xf32>
    %663 = arith.mulf %662, %648 : vector<8x128xf32>
    %664 = arith.subf %638, %646 : vector<8x128xf32>
    %665 = math.absf %664 : vector<8x128xf32>
    %cst_192 = arith.constant 5.000000e+00 : f32
    %666 = vector.broadcast %cst_192 : f32 to vector<8x128xf32>
    %667 = arith.cmpf olt, %665, %666 : vector<8x128xf32>
    %668 = arith.select %667, %638, %646 : vector<8x128xi1>, vector<8x128xf32>
    %cst_193 = arith.constant 1.000000e-03 : f32
    %669 = vector.broadcast %cst_193 : f32 to vector<8x128xf32>
    %670 = arith.mulf %634, %669 : vector<8x128xf32>
    %cst_194 = arith.constant 1.000000e-03 : f32
    %671 = vector.broadcast %cst_194 : f32 to vector<8x128xf32>
    %672 = arith.mulf %636, %671 : vector<8x128xf32>
    %cst_195 = arith.constant 1.200000e+02 : f32
    %673 = vector.broadcast %cst_195 : f32 to vector<8x128xf32>
    %674 = arith.subf %670, %673 : vector<8x128xf32>
    %cst_196 = arith.constant 9.99999974E-6 : f32
    %675 = vector.broadcast %cst_196 : f32 to vector<8x128xf32>
    %676 = arith.mulf %675, %668 : vector<8x128xf32>
    %677 = arith.subf %674, %676 : vector<8x128xf32>
    %cst_197 = arith.constant 3.000000e+01 : f32
    %678 = vector.broadcast %cst_197 : f32 to vector<8x128xf32>
    %679 = arith.subf %672, %678 : vector<8x128xf32>
    %cst_198 = arith.constant 2.000000e-05 : f32
    %680 = vector.broadcast %cst_198 : f32 to vector<8x128xf32>
    %681 = arith.mulf %680, %668 : vector<8x128xf32>
    %682 = arith.subf %679, %681 : vector<8x128xf32>
    %cst_199 = arith.constant 1.500000e-03 : f32
    %683 = vector.broadcast %cst_199 : f32 to vector<8x128xf32>
    %684 = arith.mulf %683, %677 : vector<8x128xf32>
    %cst_200 = arith.constant 5.000000e-04 : f32
    %685 = vector.broadcast %cst_200 : f32 to vector<8x128xf32>
    %686 = arith.mulf %685, %682 : vector<8x128xf32>
    %687 = arith.subf %684, %686 : vector<8x128xf32>
    %cst_201 = arith.constant 317460.313 : f32
    %688 = vector.broadcast %cst_201 : f32 to vector<8x128xf32>
    %689 = arith.mulf %687, %688 : vector<8x128xf32>
    %cst_202 = arith.constant 3.000000e-04 : f32
    %690 = vector.broadcast %cst_202 : f32 to vector<8x128xf32>
    %691 = arith.mulf %690, %677 : vector<8x128xf32>
    %cst_203 = arith.constant 2.000000e-03 : f32
    %692 = vector.broadcast %cst_203 : f32 to vector<8x128xf32>
    %693 = arith.mulf %692, %682 : vector<8x128xf32>
    %694 = arith.addf %691, %693 : vector<8x128xf32>
    %cst_204 = arith.constant 317460.313 : f32
    %695 = vector.broadcast %cst_204 : f32 to vector<8x128xf32>
    %696 = arith.mulf %694, %695 : vector<8x128xf32>
    %697 = arith.subf %642, %689 : vector<8x128xf32>
    %698 = vector.broadcast %133 : vector<1x1xf32> to vector<8x128xf32>
    %699 = arith.addf %697, %698 : vector<8x128xf32>
    %700 = arith.subf %644, %696 : vector<8x128xf32>
    %701 = vector.broadcast %134 : vector<1x1xf32> to vector<8x128xf32>
    %702 = arith.addf %700, %701 : vector<8x128xf32>
    %703 = arith.mulf %699, %699 : vector<8x128xf32>
    %704 = arith.mulf %702, %702 : vector<8x128xf32>
    %705 = arith.addf %703, %704 : vector<8x128xf32>
    %706 = math.sqrt %705 : vector<8x128xf32>
    %cst_205 = arith.constant 5.000000e-01 : f32
    %707 = vector.broadcast %cst_205 : f32 to vector<8x128xf32>
    %708 = arith.cmpf ogt, %663, %707 : vector<8x128xf32>
    %709 = vector.broadcast %392 : vector<1x1xf32> to vector<8x128xf32>
    %710 = arith.cmpf olt, %706, %709 : vector<8x128xf32>
    %711 = arith.andi %708, %710 : vector<8x128xi1>
    %cst_206 = arith.constant 1.000000e+00 : f32
    %cst_207 = arith.constant 0.000000e+00 : f32
    %712 = vector.broadcast %cst_206 : f32 to vector<8x128xf32>
    %713 = vector.broadcast %cst_207 : f32 to vector<8x128xf32>
    %714 = arith.select %711, %712, %713 : vector<8x128xi1>, vector<8x128xf32>
    %715 = vector.broadcast %123 : vector<1x1xf32> to vector<8x128xf32>
    %716 = arith.subf %642, %715 : vector<8x128xf32>
    %717 = vector.broadcast %125 : vector<1x1xf32> to vector<8x128xf32>
    %718 = arith.subf %644, %717 : vector<8x128xf32>
    %719 = vector.broadcast %605 : vector<1x1xf32> to vector<8x128xf32>
    %720 = arith.mulf %719, %716 : vector<8x128xf32>
    %721 = vector.broadcast %610 : vector<1x1xf32> to vector<8x128xf32>
    %722 = arith.mulf %721, %718 : vector<8x128xf32>
    %723 = arith.addf %720, %722 : vector<8x128xf32>
    %724 = vector.broadcast %615 : vector<1x1xf32> to vector<8x128xf32>
    %725 = arith.addf %723, %724 : vector<8x128xf32>
    %726 = vector.broadcast %127 : vector<1x1xf32> to vector<8x128xf32>
    %727 = arith.addf %725, %726 : vector<8x128xf32>
    %728 = vector.broadcast %620 : vector<1x1xf32> to vector<8x128xf32>
    %729 = arith.mulf %728, %716 : vector<8x128xf32>
    %730 = vector.broadcast %625 : vector<1x1xf32> to vector<8x128xf32>
    %731 = arith.mulf %730, %718 : vector<8x128xf32>
    %732 = arith.addf %729, %731 : vector<8x128xf32>
    %733 = vector.broadcast %630 : vector<1x1xf32> to vector<8x128xf32>
    %734 = arith.addf %732, %733 : vector<8x128xf32>
    %735 = vector.broadcast %129 : vector<1x1xf32> to vector<8x128xf32>
    %736 = arith.addf %734, %735 : vector<8x128xf32>
    %737 = arith.subf %727, %642 : vector<8x128xf32>
    %738 = arith.subf %736, %644 : vector<8x128xf32>
    %739 = arith.mulf %737, %737 : vector<8x128xf32>
    %740 = arith.mulf %738, %738 : vector<8x128xf32>
    %741 = arith.addf %739, %740 : vector<8x128xf32>
    %742 = math.sqrt %741 : vector<8x128xf32>
    %743 = arith.mulf %714, %742 : vector<8x128xf32>
    %744 = arith.addf %4, %743 : vector<8x128xf32>
    %c1_i32_208 = arith.constant 1 : i32
    %cst_209 = arith.constant dense<0.000000e+00> : vector<8xf32>
    %745 = vector.multi_reduction <add>, %744, %cst_209 [1] : vector<8x128xf32> to vector<8xf32>
    %746 = vector.shape_cast %745 : vector<8xf32> to vector<8x1xf32>
    %cst_210 = arith.constant dense<0.000000e+00> : vector<1xf32>
    %747 = vector.multi_reduction <add>, %746, %cst_210 [0] : vector<8x1xf32> to vector<1xf32>
    %748 = vector.shape_cast %747 : vector<1xf32> to vector<1x1xf32>
    %cst_211 = arith.constant 9.99999968E-21 : f32
    %749 = vector.broadcast %cst_211 : f32 to vector<1x1xf32>
    %750 = arith.maximumf %531, %749 : vector<1x1xf32>
    %751 = arith.divf %748, %750 : vector<1x1xf32>
    %cst_212 = arith.constant 1.000000e+01 : f32
    %752 = vector.broadcast %cst_212 : f32 to vector<1x1xf32>
    %753 = arith.mulf %306, %752 : vector<1x1xf32>
    %754 = arith.addf %304, %753 : vector<1x1xf32>
    %755 = arith.addf %754, %308 : vector<1x1xf32>
    %756 = arith.addf %755, %316 : vector<1x1xf32>
    %757 = arith.addf %756, %751 : vector<1x1xf32>
    %758 = tpu.iota {dimensions = array<i32: 1>} : vector<1x128xi32>
    %cst_213 = arith.constant 0.000000e+00 : f32
    %759 = vector.broadcast %cst_213 : f32 to vector<1x128xf32>
    %c0_i32_214 = arith.constant 0 : i32
    %760 = vector.broadcast %c0_i32_214 : i32 to vector<1x128xi32>
    %761 = arith.cmpi eq, %758, %760 : vector<1x128xi32>
    %cst_215 = arith.constant 0.000000e+00 : f32
    %762 = vector.shape_cast %757 : vector<1x1xf32> to vector<1x1xf32>
    %763 = vector.broadcast %762 : vector<1x1xf32> to vector<1x128xf32>
    %764 = vector.broadcast %cst_215 : f32 to vector<1x128xf32>
    %765 = arith.select %761, %763, %764 : vector<1x128xi1>, vector<1x128xf32>
    %766 = arith.addf %759, %765 : vector<1x128xf32>
    %c1_i32_216 = arith.constant 1 : i32
    %767 = vector.broadcast %c1_i32_216 : i32 to vector<1x128xi32>
    %768 = arith.cmpi eq, %758, %767 : vector<1x128xi32>
    %cst_217 = arith.constant 0.000000e+00 : f32
    %769 = vector.shape_cast %304 : vector<1x1xf32> to vector<1x1xf32>
    %770 = vector.broadcast %769 : vector<1x1xf32> to vector<1x128xf32>
    %771 = vector.broadcast %cst_217 : f32 to vector<1x128xf32>
    %772 = arith.select %768, %770, %771 : vector<1x128xi1>, vector<1x128xf32>
    %773 = arith.addf %766, %772 : vector<1x128xf32>
    %c2_i32 = arith.constant 2 : i32
    %774 = vector.broadcast %c2_i32 : i32 to vector<1x128xi32>
    %775 = arith.cmpi eq, %758, %774 : vector<1x128xi32>
    %cst_218 = arith.constant 0.000000e+00 : f32
    %776 = vector.shape_cast %306 : vector<1x1xf32> to vector<1x1xf32>
    %777 = vector.broadcast %776 : vector<1x1xf32> to vector<1x128xf32>
    %778 = vector.broadcast %cst_218 : f32 to vector<1x128xf32>
    %779 = arith.select %775, %777, %778 : vector<1x128xi1>, vector<1x128xf32>
    %780 = arith.addf %773, %779 : vector<1x128xf32>
    %c3_i32 = arith.constant 3 : i32
    %781 = vector.broadcast %c3_i32 : i32 to vector<1x128xi32>
    %782 = arith.cmpi eq, %758, %781 : vector<1x128xi32>
    %cst_219 = arith.constant 0.000000e+00 : f32
    %783 = vector.shape_cast %308 : vector<1x1xf32> to vector<1x1xf32>
    %784 = vector.broadcast %783 : vector<1x1xf32> to vector<1x128xf32>
    %785 = vector.broadcast %cst_219 : f32 to vector<1x128xf32>
    %786 = arith.select %782, %784, %785 : vector<1x128xi1>, vector<1x128xf32>
    %787 = arith.addf %780, %786 : vector<1x128xf32>
    %c4_i32 = arith.constant 4 : i32
    %788 = vector.broadcast %c4_i32 : i32 to vector<1x128xi32>
    %789 = arith.cmpi eq, %758, %788 : vector<1x128xi32>
    %cst_220 = arith.constant 0.000000e+00 : f32
    %790 = vector.shape_cast %132 : vector<1x1xf32> to vector<1x1xf32>
    %791 = vector.broadcast %790 : vector<1x1xf32> to vector<1x128xf32>
    %792 = vector.broadcast %cst_220 : f32 to vector<1x128xf32>
    %793 = arith.select %789, %791, %792 : vector<1x128xi1>, vector<1x128xf32>
    %794 = arith.addf %787, %793 : vector<1x128xf32>
    %c5_i32 = arith.constant 5 : i32
    %795 = vector.broadcast %c5_i32 : i32 to vector<1x128xi32>
    %796 = arith.cmpi eq, %758, %795 : vector<1x128xi32>
    %cst_221 = arith.constant 0.000000e+00 : f32
    %797 = vector.shape_cast %316 : vector<1x1xf32> to vector<1x1xf32>
    %798 = vector.broadcast %797 : vector<1x1xf32> to vector<1x128xf32>
    %799 = vector.broadcast %cst_221 : f32 to vector<1x128xf32>
    %800 = arith.select %796, %798, %799 : vector<1x128xi1>, vector<1x128xf32>
    %801 = arith.addf %794, %800 : vector<1x128xf32>
    %c6_i32 = arith.constant 6 : i32
    %802 = vector.broadcast %c6_i32 : i32 to vector<1x128xi32>
    %803 = arith.cmpi eq, %758, %802 : vector<1x128xi32>
    %cst_222 = arith.constant 0.000000e+00 : f32
    %804 = vector.shape_cast %751 : vector<1x1xf32> to vector<1x1xf32>
    %805 = vector.broadcast %804 : vector<1x1xf32> to vector<1x128xf32>
    %806 = vector.broadcast %cst_222 : f32 to vector<1x128xf32>
    %807 = arith.select %803, %805, %806 : vector<1x128xi1>, vector<1x128xf32>
    %808 = arith.addf %801, %807 : vector<1x128xf32>
    %c0_223 = arith.constant 0 : index
    %c0_224 = arith.constant 0 : index
    %809 = vector.load %arg2[%c0_223, %c0_224] : memref<1x128xf32, #tpu.memory_space<vmem>>, vector<1x128xf32>
    tpu.vector_store %arg2[%c0_223, %c0_224], %808 {strides = array<i32>} : memref<1x128xf32, #tpu.memory_space<vmem>>, vector<1x128xf32>,
    return
  }
}

</mosaic_0001>

<llo_original>
// kernel: tpu_custom_call.1
$region0: #{tpu_custom_call.1}
  #allocation0 [shape = 'u32[]', space=smem, size = 0x4, offset = 0x4, fixed_abs, tag = 'smem constant byte address 0x4 - core index']
  #allocation1 [shape = 'u32[144,128]{1,0:T(1,128)}', space=vmem, size = 0x12000, scoped, tag = 'internal scratch']
  %s0 = inlined_call_operand.hbm [shape: f32[8], index: 0, kind: input, shape index: {}]
  %s1 = inlined_call_operand.hbm [shape: f32[64,128], index: 1, kind: input, shape index: {}]
  %s2 = inlined_call_operand.hbm [shape: f32[1,128], index: 2, kind: output, shape index: {}]
  %s3 = sld [smem:[#allocation0]]
  $region26: #{tpu_custom_call.1} parent=0
    _
  %s5 = ssub.s32 1, %s3
  %s6 = scalar_select 0, %s5, %s3
  $region1: #{tpu_custom_call.1} parent=0
    #allocation2 [shape = 'u8[512]{0}', space=smem, size = 0x200, scoped, tag = 'input window, operand 0, single buffered']
    #allocation3 [shape = 's32[1]{0}', space=sflag, size = 0x4, scoped, tag = 'scoped memory for tpu_custom_call.1']
    #allocation4 [shape = 's32[1]{0}', space=sflag, size = 0x4, scoped, tag = 'scoped memory for tpu_custom_call.1']
    #allocation5 [shape = 's32[1]{0}', space=sflag, size = 0x4, scoped, tag = 'scoped memory for tpu_custom_call.1']
    #allocation6 [shape = 'u8[32768]{0}', space=vmem, size = 0x8000, scoped, tag = 'input window, operand 1, single buffered']
    #allocation7 [shape = 'u8[512]{0}', space=vmem, size = 0x400, scoped, tag = 'output window, operand 0, single buffered']
    %7 = vsyncpa [#allocation5], 0
    %8 = vsyncpa [#allocation3], 0
    %9 = vsyncpa [#allocation4], 0
    // Predicated region
    $region2: #{tpu_custom_call.1} parent=1 // pred_check
      _
    $region3: #{tpu_custom_call.1} parent=1 // pred_check_branch
      %11 = sbr.rel (0) target = $region5
    $region4: #{tpu_custom_call.1} parent=1 // pred_region
      %s13 = ssub.s32 16, 16
      %14 = vsyncadd [#allocation5], %s13
      %17 = dma.hbm_to_smem %s0, 16, [#allocation2], [#allocation5]
    $region5: #{tpu_custom_call.1} parent=1 // pred_fallthru
      _
    // Predicated region
    $region6: #{tpu_custom_call.1} parent=1 // pred_check
      _
    $region7: #{tpu_custom_call.1} parent=1 // pred_check_branch
      %19 = sbr.rel (0) target = $region9
    $region8: #{tpu_custom_call.1} parent=1 // pred_region
      %s21 = ssub.s32 1024, 1024
      %22 = vsyncadd [#allocation3], %s21
      %s23 = sshll.u32 [#allocation6], 4
      %s24 = int_to_ptr.vmem [resolvable:$true] %s23
      %29 = dma.hbm_to_vmem [thread:$0]  %s1, 1024, %s24, [#allocation3], 128, 128, 8
    $region9: #{tpu_custom_call.1} parent=1 // pred_fallthru
      _
    // Predicated region
    $region10: #{tpu_custom_call.1} parent=1 // pred_check
      _
    $region11: #{tpu_custom_call.1} parent=1 // pred_check_branch
      %31 = sbr.rel (0) target = $region13
    $region12: #{tpu_custom_call.1} parent=1 // pred_region
      %32 = dma.done [#allocation5], 16
    $region13: #{tpu_custom_call.1} parent=1 // pred_fallthru
      _
    // Predicated region
    $region14: #{tpu_custom_call.1} parent=1 // pred_check
      _
    $region15: #{tpu_custom_call.1} parent=1 // pred_check_branch
      %34 = sbr.rel (0) target = $region17
    $region16: #{tpu_custom_call.1} parent=1 // pred_region
      %35 = dma.done [#allocation3], 1024
    $region17: #{tpu_custom_call.1} parent=1 // pred_fallthru
      _
    %36 = sfence
    %s37 = sld [smem:[#allocation2 + $0x1]]
    %s38 = sld [smem:[#allocation2 + $0x2]]
    %s39 = sld [smem:[#allocation2 + $0x3]]
    %s40 = sld [smem:[#allocation2 + $0x4]]
    %v41 = vld [vmem:[#allocation6] sm:$0xff]
    %v42 = vld [vmem:[#allocation6 + $0x8] sm:$0xff]
    %v43 = vld [vmem:[#allocation6 + $0x10] sm:$0xff]
    %v44 = vld [vmem:[#allocation6 + $0x18] sm:$0xff]
    %v45 = vld [vmem:[#allocation6 + $0x20] sm:$0xff]
    %v46 = vld [vmem:[#allocation6 + $0x28] sm:$0xff]
    %v47 = vld [vmem:[#allocation6 + $0x30] sm:$0xff]
    %v48 = vld [vmem:[#allocation6 + $0x38] sm:$0xff]
    %vm49 = vcmp.gt.f32.partialorder %v44, 0.5
    %v50 = vstv %s37
    %v51 = vsel %vm49, %v50, %v44
    %vm52 = vcmp.lt.f32.partialorder %v51, 0.5
    %v53 = vstv %s38
    %v54 = vsel %vm52, %v53, %v51
    %v55 = vsel %vm49, %v48, 0.0
    %v56 = vsub.f32 %v43, %v47
    %v57 = vand.u32 2147483647, %v56
    %vm58 = vcmp.lt.f32.partialorder %v57, 5.0
    %v59 = vsel %vm58, %v43, %v47
    %v60 = vmul.f32 %v41, 0.001
    %v61 = vmul.f32 %v42, 0.001
    %v62 = vsub.f32 %v60, 120.0
    %v63 = vmul.f32 %v59, 1e-05
    %v64 = vsub.f32 %v62, %v63
    %v65 = vsub.f32 %v61, 30.0
    %v66 = vmul.f32 %v59, 2e-05
    %v67 = vsub.f32 %v65, %v66
    %v68 = vmul.f32 %v64, 0.0015
    %v69 = vmul.f32 %v67, 0.0005
    %v70 = vsub.f32 %v68, %v69
    %v71 = vmul.f32 %v70, 317460.3
    %v72 = vmul.f32 %v64, 0.0003
    %v73 = vmul.f32 %v67, 0.002
    %v74 = vadd.f32 %v72, %v73
    %v75 = vmul.f32 %v74, 317460.3
    %v76 = vsub.f32 %v71, %v45
    %v77 = vsub.f32 %v75, %v46
    %v78 = vmul.f32 %v76, %v76
    %v79 = vmul.f32 %v77, %v77
    %v80 = vadd.f32 %v78, %v79
    %v81 = vrsqrt.pop %v80
    %v82 = vmul.f32 %v80, %v81
    %vm83 = vcmp.eq.f32.partialorder %v80, inf
    %v84 = vsel %vm83, %v80, %v82
    %vm85 = vcmp.eq.f32.partialorder %v80, 0.0
    %v86 = vand.u32 %v80, 2147483648
    %v87 = vsel %vm85, %v86, %v84
    %v88 = vstv %s40
    %v89 = vmul.f32 %v87, %v88
    %v90 = vtanh.pop %v89
    %v91 = vstv %s39
    %v92 = vmul.f32 %v91, %v90
    %v93 = vmul.f32 %v54, %v48
    %v94 = vmul.f32 %v45, %v48
    %v95 = vmul.f32 %v46, %v48
    %v96 = vmul.f32 %v71, %v48
    %v97 = vmul.f32 %v75, %v48
    %v98 = vmul.f32 %v92, %v55
    %v99 = vadd.f32 %v93, 0.0
    %v100 = vadd.f32 %v94, 0.0
    %v101 = vadd.f32 %v95, 0.0
    %v102 = vadd.f32 %v96, 0.0
    %v103 = vadd.f32 %v97, 0.0
    %v104 = vadd.f32 %v55, 0.0
    %v105 = vadd.f32 %v98, 0.0
    %106 = vadd.xlane.f32.xlu0 %v99
    %v107 = vpop.xlane.xlu0 %106
    %v108 = vrot.slane %v107, 4
    %v109 = vadd.f32 %v107, %v108
    %v110 = vrot.slane %v109, 2
    %v111 = vadd.f32 %v109, %v110
    %v112 = vrot.slane %v111, 1
    %v113 = vadd.f32 %v111, %v112
    %114 = vadd.xlane.f32.xlu0 %v100
    %v115 = vpop.xlane.xlu0 %114
    %v116 = vrot.slane %v115, 4
    %v117 = vadd.f32 %v115, %v116
    %v118 = vrot.slane %v117, 2
    %v119 = vadd.f32 %v117, %v118
    %v120 = vrot.slane %v119, 1
    %v121 = vadd.f32 %v119, %v120
    %122 = vadd.xlane.f32.xlu0 %v101
    %v123 = vpop.xlane.xlu0 %122
    %v124 = vrot.slane %v123, 4
    %v125 = vadd.f32 %v123, %v124
    %v126 = vrot.slane %v125, 2
    %v127 = vadd.f32 %v125, %v126
    %v128 = vrot.slane %v127, 1
    %v129 = vadd.f32 %v127, %v128
    %130 = vadd.xlane.f32.xlu0 %v102
    %v131 = vpop.xlane.xlu0 %130
    %v132 = vrot.slane %v131, 4
    %v133 = vadd.f32 %v131, %v132
    %v134 = vrot.slane %v133, 2
    %v135 = vadd.f32 %v133, %v134
    %v136 = vrot.slane %v135, 1
    %v137 = vadd.f32 %v135, %v136
    %138 = vadd.xlane.f32.xlu0 %v103
    %v139 = vpop.xlane.xlu0 %138
    %v140 = vrot.slane %v139, 4
    %v141 = vadd.f32 %v139, %v140
    %v142 = vrot.slane %v141, 2
    %v143 = vadd.f32 %v141, %v142
    %v144 = vrot.slane %v143, 1
    %v145 = vadd.f32 %v143, %v144
    %146 = vadd.xlane.f32.xlu0 %v104
    %v147 = vpop.xlane.xlu0 %146
    %v148 = vrot.slane %v147, 4
    %v149 = vadd.f32 %v147, %v148
    %v150 = vrot.slane %v149, 2
    %v151 = vadd.f32 %v149, %v150
    %v152 = vrot.slane %v151, 1
    %v153 = vadd.f32 %v151, %v152
    %154 = vadd.xlane.f32.xlu0 %v105
    %v155 = vpop.xlane.xlu0 %154
    %v156 = vrot.slane %v155, 4
    %v157 = vadd.f32 %v155, %v156
    %v158 = vrot.slane %v157, 2
    %v159 = vadd.f32 %v157, %v158
    %v160 = vrot.slane %v159, 1
    %v161 = vadd.f32 %v159, %v160
    %v162 = vmul.f32 %v113, 0.00390625
    %v163 = vmul.f32 %v121, 0.00390625
    %v164 = vmul.f32 %v129, 0.00390625
    %v165 = vmul.f32 %v137, 0.00390625
    %v166 = vmul.f32 %v145, 0.00390625
    %v167 = vmax.f32 %v153, 1e-20
    %v168 = vrcp.pop %v167
    %v169 = vmul.f32 %v161, %v168
    %v170 = vsub.f32 %v165, %v163
    %v171 = vsub.f32 %v166, %v164
    %v172 = vsub.f32 %v54, %v162
    %v173 = vadd.f32 %v172, 1.0
    %v174 = vmax.f32 %v173, 0.0
    %v175 = vmul.f32 %v174, %v48
    %v176 = vmul.f32 %v45, 0.002
    %v177 = vadd.f32 %v176, 120.0
    %v178 = vmul.f32 %v46, 0.0005
    %v179 = vadd.f32 %v177, %v178
    %v180 = vmul.f32 %v47, 1e-05
    %v181 = vadd.f32 %v179, %v180
    %v182 = vmul.f32 %v45, -0.0003
    %v183 = vadd.f32 %v182, 30.0
    %v184 = vmul.f32 %v46, 0.0015
    %v185 = vadd.f32 %v183, %v184
    %v186 = vmul.f32 %v47, 2e-05
    %v187 = vadd.f32 %v185, %v186
    %v188 = vmul.f32 %v181, 1000.0
    %v189 = vmul.f32 %v187, 1000.0
    %v190 = vsub.f32 %v41, %v188
    %v191 = vmul.f32 %v190, %v190
    %v192 = vsub.f32 %v42, %v189
    %v193 = vmul.f32 %v192, %v192
    %v194 = vadd.f32 %v191, %v193
    %v195 = vrsqrt.pop %v194
    %v196 = vmul.f32 %v194, %v195
    %vm197 = vcmp.eq.f32.partialorder %v194, inf
    %v198 = vsel %vm197, %v194, %v196
    %vm199 = vcmp.eq.f32.partialorder %v194, 0.0
    %v200 = vand.u32 %v194, 2147483648
    %v201 = vsel %vm199, %v200, %v198
    %v202 = vsub.f32 %v45, %v71
    %v203 = vadd.f32 %v202, %v170
    %v204 = vsub.f32 %v46, %v75
    %v205 = vadd.f32 %v204, %v171
    %v206 = vmul.f32 %v203, %v203
    %v207 = vmul.f32 %v205, %v205
    %v208 = vadd.f32 %v206, %v207
    %v209 = vrsqrt.pop %v208
    %v210 = vmul.f32 %v208, %v209
    %vm211 = vcmp.eq.f32.partialorder %v208, inf
    %v212 = vsel %vm211, %v208, %v210
    %vm213 = vcmp.eq.f32.partialorder %v208, 0.0
    %v214 = vand.u32 %v208, 2147483648
    %v215 = vsel %vm213, %v214, %v212
    %v216 = vmul.f32 %v201, %v175
    %v217 = vmul.f32 %v57, %v88
    %v218 = vtanh.pop %v217
    %v219 = vmul.f32 %v91, %v218
    %v220 = vmul.f32 %v219, %v175
    %v221 = vmul.f32 %v92, %v175
    %v222 = vmul.f32 %v76, %v88
    %v223 = vtanh.pop %v222
    %v224 = vmul.f32 %v91, %v223
    %v225 = vmul.f32 %v224, %v175
    %v226 = vmul.f32 %v77, %v88
    %v227 = vtanh.pop %v226
    %v228 = vmul.f32 %v91, %v227
    %v229 = vmul.f32 %v228, %v175
    %v230 = vmul.f32 %v215, %v48
    %v231 = vadd.f32 %v216, 0.0
    %v232 = vadd.f32 %v220, 0.0
    %v233 = vadd.f32 %v221, 0.0
    %v234 = vadd.f32 %v225, 0.0
    %v235 = vadd.f32 %v229, 0.0
    %v236 = vadd.f32 %v230, 0.0
    %237 = vadd.xlane.f32.xlu0 %v231
    %v238 = vpop.xlane.xlu0 %237
    %v239 = vrot.slane %v238, 4
    %v240 = vadd.f32 %v238, %v239
    %v241 = vrot.slane %v240, 2
    %v242 = vadd.f32 %v240, %v241
    %v243 = vrot.slane %v242, 1
    %v244 = vadd.f32 %v242, %v243
    %245 = vadd.xlane.f32.xlu0 %v232
    %v246 = vpop.xlane.xlu0 %245
    %v247 = vrot.slane %v246, 4
    %v248 = vadd.f32 %v246, %v247
    %v249 = vrot.slane %v248, 2
    %v250 = vadd.f32 %v248, %v249
    %v251 = vrot.slane %v250, 1
    %v252 = vadd.f32 %v250, %v251
    %253 = vadd.xlane.f32.xlu0 %v233
    %v254 = vpop.xlane.xlu0 %253
    %v255 = vrot.slane %v254, 4
    %v256 = vadd.f32 %v254, %v255
    %v257 = vrot.slane %v256, 2
    %v258 = vadd.f32 %v256, %v257
    %v259 = vrot.slane %v258, 1
    %v260 = vadd.f32 %v258, %v259
    %261 = vadd.xlane.f32.xlu0 %v234
    %v262 = vpop.xlane.xlu0 %261
    %v263 = vrot.slane %v262, 4
    %v264 = vadd.f32 %v262, %v263
    %v265 = vrot.slane %v264, 2
    %v266 = vadd.f32 %v264, %v265
    %v267 = vrot.slane %v266, 1
    %v268 = vadd.f32 %v266, %v267
    %269 = vadd.xlane.f32.xlu0 %v235
    %v270 = vpop.xlane.xlu0 %269
    %v271 = vrot.slane %v270, 4
    %v272 = vadd.f32 %v270, %v271
    %v273 = vrot.slane %v272, 2
    %v274 = vadd.f32 %v272, %v273
    %v275 = vrot.slane %v274, 1
    %v276 = vadd.f32 %v274, %v275
    %277 = vadd.xlane.f32.xlu0 %v236
    %v278 = vpop.xlane.xlu0 %277
    %v279 = vrot.slane %v278, 4
    %v280 = vadd.f32 %v278, %v279
    %v281 = vrot.slane %v280, 2
    %v282 = vadd.f32 %v280, %v281
    %v283 = vrot.slane %v282, 1
    %v284 = vadd.f32 %v282, %v283
    %v285 = vmul.f32 %v244, 0.00390625
    %v286 = vmul.f32 %v252, 0.00390625
    %v287 = vmul.f32 %v260, 0.00390625
    %v288 = vmul.f32 %v268, 0.00390625
    %v289 = vmul.f32 %v276, 0.00390625
    %v290 = vmul.f32 %v288, %v288
    %v291 = vmul.f32 %v289, %v289
    %v292 = vadd.f32 %v290, %v291
    %v293 = vrsqrt.pop %v292
    %v294 = vmul.f32 %v292, %v293
    %vm295 = vcmp.eq.f32.partialorder %v292, inf
    %v296 = vsel %vm295, %v292, %v294
    %vm297 = vcmp.eq.f32.partialorder %v292, 0.0
    %v298 = vand.u32 %v292, 2147483648
    %v299 = vsel %vm297, %v298, %v296
    %v300 = vmul.f32 %v284, 0.00390625
    %v301 = vsub.f32 %v215, %v300
    %v302 = vmul.f32 %v301, %v301
    %v303 = vmul.f32 %v302, %v48
    %v304 = vadd.f32 %v303, 0.0
    %305 = vadd.xlane.f32.xlu0 %v304
    %v306 = vpop.xlane.xlu0 %305
    %v307 = vrot.slane %v306, 4
    %v308 = vadd.f32 %v306, %v307
    %v309 = vrot.slane %v308, 2
    %v310 = vadd.f32 %v308, %v309
    %v311 = vrot.slane %v310, 1
    %v312 = vadd.f32 %v310, %v311
    %v313 = vmul.f32 %v312, 0.003921569
    %v314 = vmax.f32 %v313, 0.0
    %v315 = vrsqrt.pop %v314
    %v316 = vmul.f32 %v314, %v315
    %vm317 = vcmp.eq.f32.partialorder %v314, inf
    %v318 = vsel %vm317, %v314, %v316
    %vm319 = vcmp.eq.f32.partialorder %v314, 0.0
    %v320 = vand.u32 %v314, 2147483648
    %v321 = vsel %vm319, %v320, %v318
    %v322 = vadd.f32 %v300, %v321
    %vm323 = vcmp.gt.f32.partialorder %v175, 0.5
    %vm324 = vcmp.lt.f32.partialorder %v215, %v322
    %vm325 = vmand %vm323, %vm324
    %v326 = vsel %vm325, 1.0, 0.0
    %v327 = vsub.f32 %v45, %v163
    %v328 = vsub.f32 %v46, %v164
    %v329 = vsub.f32 %v71, %v165
    %v330 = vsub.f32 %v75, %v166
    %v331 = vmul.f32 %v326, %v327
    %v332 = vmul.f32 %v326, %v328
    %v333 = vmul.f32 %v331, %v327
    %v334 = vmul.f32 %v331, %v328
    %v335 = vmul.f32 %v332, %v328
    %v336 = vmul.f32 %v331, %v329
    %v337 = vmul.f32 %v332, %v329
    %v338 = vmul.f32 %v326, %v329
    %v339 = vmul.f32 %v331, %v330
    %v340 = vmul.f32 %v332, %v330
    %v341 = vmul.f32 %v326, %v330
    %v342 = vadd.f32 %v333, 0.0
    %v343 = vadd.f32 %v334, 0.0
    %v344 = vadd.f32 %v331, 0.0
    %v345 = vadd.f32 %v335, 0.0
    %v346 = vadd.f32 %v332, 0.0
    %v347 = vadd.f32 %v326, 0.0
    %v348 = vadd.f32 %v336, 0.0
    %v349 = vadd.f32 %v337, 0.0
    %v350 = vadd.f32 %v338, 0.0
    %v351 = vadd.f32 %v339, 0.0
    %v352 = vadd.f32 %v340, 0.0
    %v353 = vadd.f32 %v341, 0.0
    %354 = vadd.xlane.f32.xlu0 %v342
    %v355 = vpop.xlane.xlu0 %354
    %v356 = vrot.slane %v355, 4
    %v357 = vadd.f32 %v355, %v356
    %v358 = vrot.slane %v357, 2
    %v359 = vadd.f32 %v357, %v358
    %v360 = vrot.slane %v359, 1
    %v361 = vadd.f32 %v359, %v360
    %362 = vadd.xlane.f32.xlu0 %v343
    %v363 = vpop.xlane.xlu0 %362
    %v364 = vrot.slane %v363, 4
    %v365 = vadd.f32 %v363, %v364
    %v366 = vrot.slane %v365, 2
    %v367 = vadd.f32 %v365, %v366
    %v368 = vrot.slane %v367, 1
    %v369 = vadd.f32 %v367, %v368
    %370 = vadd.xlane.f32.xlu0 %v344
    %v371 = vpop.xlane.xlu0 %370
    %v372 = vrot.slane %v371, 4
    %v373 = vadd.f32 %v371, %v372
    %v374 = vrot.slane %v373, 2
    %v375 = vadd.f32 %v373, %v374
    %v376 = vrot.slane %v375, 1
    %v377 = vadd.f32 %v375, %v376
    %378 = vadd.xlane.f32.xlu0 %v345
    %v379 = vpop.xlane.xlu0 %378
    %v380 = vrot.slane %v379, 4
    %v381 = vadd.f32 %v379, %v380
    %v382 = vrot.slane %v381, 2
    %v383 = vadd.f32 %v381, %v382
    %v384 = vrot.slane %v383, 1
    %v385 = vadd.f32 %v383, %v384
    %386 = vadd.xlane.f32.xlu0 %v346
    %v387 = vpop.xlane.xlu0 %386
    %v388 = vrot.slane %v387, 4
    %v389 = vadd.f32 %v387, %v388
    %v390 = vrot.slane %v389, 2
    %v391 = vadd.f32 %v389, %v390
    %v392 = vrot.slane %v391, 1
    %v393 = vadd.f32 %v391, %v392
    %394 = vadd.xlane.f32.xlu0 %v347
    %v395 = vpop.xlane.xlu0 %394
    %v396 = vrot.slane %v395, 4
    %v397 = vadd.f32 %v395, %v396
    %v398 = vrot.slane %v397, 2
    %v399 = vadd.f32 %v397, %v398
    %v400 = vrot.slane %v399, 1
    %v401 = vadd.f32 %v399, %v400
    %402 = vadd.xlane.f32.xlu0 %v348
    %v403 = vpop.xlane.xlu0 %402
    %v404 = vrot.slane %v403, 4
    %v405 = vadd.f32 %v403, %v404
    %v406 = vrot.slane %v405, 2
    %v407 = vadd.f32 %v405, %v406
    %v408 = vrot.slane %v407, 1
    %v409 = vadd.f32 %v407, %v408
    %410 = vadd.xlane.f32.xlu0 %v349
    %v411 = vpop.xlane.xlu0 %410
    %v412 = vrot.slane %v411, 4
    %v413 = vadd.f32 %v411, %v412
    %v414 = vrot.slane %v413, 2
    %v415 = vadd.f32 %v413, %v414
    %v416 = vrot.slane %v415, 1
    %v417 = vadd.f32 %v415, %v416
    %418 = vadd.xlane.f32.xlu0 %v350
    %v419 = vpop.xlane.xlu0 %418
    %v420 = vrot.slane %v419, 4
    %v421 = vadd.f32 %v419, %v420
    %v422 = vrot.slane %v421, 2
    %v423 = vadd.f32 %v421, %v422
    %v424 = vrot.slane %v423, 1
    %v425 = vadd.f32 %v423, %v424
    %426 = vadd.xlane.f32.xlu0 %v351
    %v427 = vpop.xlane.xlu0 %426
    %v428 = vrot.slane %v427, 4
    %v429 = vadd.f32 %v427, %v428
    %v430 = vrot.slane %v429, 2
    %v431 = vadd.f32 %v429, %v430
    %v432 = vrot.slane %v431, 1
    %v433 = vadd.f32 %v431, %v432
    %434 = vadd.xlane.f32.xlu0 %v352
    %v435 = vpop.xlane.xlu0 %434
    %v436 = vrot.slane %v435, 4
    %v437 = vadd.f32 %v435, %v436
    %v438 = vrot.slane %v437, 2
    %v439 = vadd.f32 %v437, %v438
    %v440 = vrot.slane %v439, 1
    %v441 = vadd.f32 %v439, %v440
    %442 = vadd.xlane.f32.xlu0 %v353
    %v443 = vpop.xlane.xlu0 %442
    %v444 = vrot.slane %v443, 4
    %v445 = vadd.f32 %v443, %v444
    %v446 = vrot.slane %v445, 2
    %v447 = vadd.f32 %v445, %v446
    %v448 = vrot.slane %v447, 1
    %v449 = vadd.f32 %v447, %v448
    %v450 = vmul.f32 %v385, %v401
    %v451 = vmul.f32 %v393, %v393
    %v452 = vsub.f32 %v450, %v451
    %v453 = vmul.f32 %v361, %v452
    %v454 = vmul.f32 %v369, %v401
    %v455 = vmul.f32 %v393, %v377
    %v456 = vsub.f32 %v454, %v455
    %v457 = vmul.f32 %v369, %v456
    %v458 = vsub.f32 %v453, %v457
    %v459 = vmul.f32 %v369, %v393
    %v460 = vmul.f32 %v385, %v377
    %v461 = vsub.f32 %v459, %v460
    %v462 = vmul.f32 %v377, %v461
    %v463 = vadd.f32 %v458, %v462
    %v464 = vand.u32 2147483647, %v463
    %vm465 = vcmp.gt.f32.partialorder %v464, 1e-20
    %v466 = vsel %vm465, %v463, 1e-20
    %v467 = vrcp.pop %v466
    %v468 = vmul.f32 1.0, %v467
    %v469 = vmul.f32 %v452, %v468
    %v470 = vsub.f32 %v455, %v454
    %v471 = vmul.f32 %v470, %v468
    %v472 = vmul.f32 %v461, %v468
    %v473 = vmul.f32 %v361, %v401
    %v474 = vmul.f32 %v377, %v377
    %v475 = vsub.f32 %v473, %v474
    %v476 = vmul.f32 %v475, %v468
    %v477 = vmul.f32 %v377, %v369
    %v478 = vmul.f32 %v361, %v393
    %v479 = vsub.f32 %v477, %v478
    %v480 = vmul.f32 %v479, %v468
    %v481 = vmul.f32 %v361, %v385
    %v482 = vmul.f32 %v369, %v369
    %v483 = vsub.f32 %v481, %v482
    %v484 = vmul.f32 %v483, %v468
    %v485 = vmul.f32 %v469, %v409
    %v486 = vmul.f32 %v471, %v417
    %v487 = vadd.f32 %v485, %v486
    %v488 = vmul.f32 %v472, %v425
    %v489 = vadd.f32 %v487, %v488
    %v490 = vmul.f32 %v471, %v409
    %v491 = vmul.f32 %v476, %v417
    %v492 = vadd.f32 %v490, %v491
    %v493 = vmul.f32 %v480, %v425
    %v494 = vadd.f32 %v492, %v493
    %v495 = vmul.f32 %v472, %v409
    %v496 = vmul.f32 %v480, %v417
    %v497 = vadd.f32 %v495, %v496
    %v498 = vmul.f32 %v484, %v425
    %v499 = vadd.f32 %v497, %v498
    %v500 = vmul.f32 %v469, %v433
    %v501 = vmul.f32 %v471, %v441
    %v502 = vadd.f32 %v500, %v501
    %v503 = vmul.f32 %v472, %v449
    %v504 = vadd.f32 %v502, %v503
    %v505 = vmul.f32 %v471, %v433
    %v506 = vmul.f32 %v476, %v441
    %v507 = vadd.f32 %v505, %v506
    %v508 = vmul.f32 %v480, %v449
    %v509 = vadd.f32 %v507, %v508
    %v510 = vmul.f32 %v472, %v433
    %v511 = vmul.f32 %v480, %v441
    %v512 = vadd.f32 %v510, %v511
    %v513 = vmul.f32 %v484, %v449
    %v514 = vadd.f32 %v512, %v513
    %v515 = vmul.f32 %v489, %v327
    %v516 = vmul.f32 %v494, %v328
    %v517 = vadd.f32 %v515, %v516
    %v518 = vadd.f32 %v517, %v499
    %v519 = vadd.f32 %v518, %v165
    %v520 = vmul.f32 %v504, %v327
    %v521 = vmul.f32 %v509, %v328
    %v522 = vadd.f32 %v520, %v521
    %v523 = vadd.f32 %v522, %v514
    %v524 = vadd.f32 %v523, %v166
    %v525 = vsub.f32 %v519, %v45
    %v526 = vsub.f32 %v524, %v46
    %v527 = vmul.f32 %v525, %v525
    %v528 = vmul.f32 %v526, %v526
    %v529 = vadd.f32 %v527, %v528
    %v530 = vrsqrt.pop %v529
    %v531 = vmul.f32 %v529, %v530
    %vm532 = vcmp.eq.f32.partialorder %v529, inf
    %v533 = vsel %vm532, %v529, %v531
    %vm534 = vcmp.eq.f32.partialorder %v529, 0.0
    %v535 = vand.u32 %v529, 2147483648
    %v536 = vsel %vm534, %v535, %v533
    %v537 = vmul.f32 %v326, %v536
    %v538 = vadd.f32 %v537, 0.0
    %539 = vadd.xlane.f32.xlu0 %v538
    %v540 = vpop.xlane.xlu0 %539
    %v541 = vrot.slane %v540, 4
    %v542 = vadd.f32 %v540, %v541
    %v543 = vrot.slane %v542, 2
    %v544 = vadd.f32 %v542, %v543
    %v545 = vrot.slane %v544, 1
    %v546 = vadd.f32 %v544, %v545
    %v547 = vmax.f32 %v401, 1e-20
    %v548 = vrcp.pop %v547
    %v549 = vmul.f32 %v546, %v548
    %v550 = vmul.f32 %v286, 10.0
    %v551 = vadd.f32 %v285, %v550
    %v552 = vadd.f32 %v551, %v287
    %v553 = vadd.f32 %v552, %v299
    %v554 = vadd.f32 %v553, %v549
    %v555 = vlaneseq
    %v556 = vand.u32 %v555, 127
    %vm557 = vcmp.eq.s32.totalorder %v556, 0
    %v558 = vsel %vm557, %v554, 0.0
    %v559 = vadd.f32 %v558, 0.0
    %vm560 = vcmp.eq.s32.totalorder %v556, 1
    %v561 = vsel %vm560, %v285, 0.0
    %v562 = vadd.f32 %v559, %v561
    %vm563 = vcmp.eq.s32.totalorder %v556, 2
    %v564 = vsel %vm563, %v286, 0.0
    %v565 = vadd.f32 %v562, %v564
    %vm566 = vcmp.eq.s32.totalorder %v556, 3
    %v567 = vsel %vm566, %v287, 0.0
    %v568 = vadd.f32 %v565, %v567
    %vm569 = vcmp.eq.s32.totalorder %v556, 4
    %v570 = vsel %vm569, %v169, 0.0
    %v571 = vadd.f32 %v568, %v570
    %vm572 = vcmp.eq.s32.totalorder %v556, 5
    %v573 = vsel %vm572, %v299, 0.0
    %v574 = vadd.f32 %v571, %v573
    %vm575 = vcmp.eq.s32.totalorder %v556, 6
    %v576 = vsel %vm575, %v549, 0.0
    %v577 = vadd.f32 %v574, %v576
    %578 = vst [vmem:[#allocation7] sm:$0x1] %v577
    // Predicated region
    $region18: #{tpu_custom_call.1} parent=1 // pred_check
      _
    $region19: #{tpu_custom_call.1} parent=1 // pred_check_branch
      %580 = sbr.rel (0) target = $region21
    $region20: #{tpu_custom_call.1} parent=1 // pred_region
      %s582 = ssub.s32 16, 16
      %583 = vsyncadd [#allocation4], %s582
      %s585 = sshll.u32 [#allocation7], 4
      %s586 = int_to_ptr.vmem [resolvable:$true] %s585
      %588 = dma.vmem_to_hbm [thread:$0]  %s586, 16, %s2, [#allocation4]
    $region21: #{tpu_custom_call.1} parent=1 // pred_fallthru
      _
    // Predicated region
    $region22: #{tpu_custom_call.1} parent=1 // pred_check
      _
    $region23: #{tpu_custom_call.1} parent=1 // pred_check_branch
      %590 = sbr.rel (0) target = $region25
    $region24: #{tpu_custom_call.1} parent=1 // pred_region
      %591 = dma.done [#allocation4], 16
    $region25: #{tpu_custom_call.1} parent=1 // pred_fallthru
      _
    %592 = vsyncpa [#allocation3], 1
    %593 = vsyncpa [#allocation4], 1
    %594 = vsyncpa [#allocation5], 1

</llo_original>
